<compile_context>
chip_gen: v6e
topology: v6e:2x2x1
jax: 0.10.0
libtpu: 0.0.40
codegen_flags: <defaults>
</compile_context>

<pallas_src>
import functools

import jax
import jax.numpy as jnp
from jax.experimental import pallas as pl
from jax.experimental.pallas import tpu as pltpu


def _spatial_gate_kernel(w_ref, shift_ref, x_ref, o_ref, *, H, W, KS):
    """One batch element: channel pool + 7x7 conv + folded BN + sigmoid.

    w_ref    : (2, KS*KS) SMEM  conv weights with BN scale folded in
                                (row 0 -> channel-max input, row 1 -> channel-mean)
    shift_ref: (1,)       SMEM  folded BN shift (beta - running_mean * scale)
    x_ref    : (1, C, H*W) VMEM input, spatial flattened onto the lane axis
    o_ref    : (1, 1, H*W) VMEM sigmoid gate (lane-dense store)
    """
    C = x_ref.shape[1]
    HW = H * W
    R = KS // 2
    # flat 1-D halo: big enough that any row over/under-flow of a tap lands in
    # the zero pad; rounded to a multiple of 128 so the concat stays tile-aligned
    PADL = ((R * W + R + 127) // 128) * 128

    x = x_ref[0]                                          # (C, HW) f32
    # ChannelPool: [max over C ; mean over C]  (tiny cross-sublane reductions)
    mx = jnp.max(x, axis=0, keepdims=True)                # (1, HW)
    mn = jnp.sum(x, axis=0, keepdims=True) * (1.0 / C)    # (1, HW)

    # zero-halo-padded flat rows: padded[:, PADL + p] == pooled[:, p]
    zpad = jnp.zeros((1, PADL), jnp.float32)
    pmx = jnp.concatenate([zpad, mx, zpad], axis=1)       # (1, HW + 2*PADL)
    pmn = jnp.concatenate([zpad, mn, zpad], axis=1)

    # column index of every flattened output position (masks W wrap-around;
    # H over/under-flow is already absorbed by the zero halo)
    col = jax.lax.broadcasted_iota(jnp.int32, (1, HW), 1) % W

    # 7x7 conv as 49 shifted VPU multiply-accumulates (shift-and-MAC; the lane
    # shift is a static slice of the padded row -> pure relayout, no MXU).
    acc = jnp.full((1, HW), shift_ref[0], jnp.float32)    # BN shift seeds the acc
    for kx in range(KS):
        dx = kx - R
        ok = (col + dx >= 0) & (col + dx < W)             # one mask per column offset
        part = None
        for ky in range(KS):
            dy = ky - R
            start = PADL + dy * W + dx                    # static lane offset
            tap = (w_ref[0, ky * KS + kx] * pmx[:, start:start + HW]
                   + w_ref[1, ky * KS + kx] * pmn[:, start:start + HW])
            part = tap if part is None else part + tap
        acc = acc + jnp.where(ok, part, 0.0)

    o_ref[0] = jax.nn.sigmoid(acc)                        # fused epilogue (EUP)


@jax.jit
def spatial_gate_forward(x, weight, gamma, beta, running_mean, running_var,
                         eps=1e-5):
    """SpatialGate forward.

    x      : (N, C, H, W)   input feature map (NCHW, PyTorch convention)
    weight : (1, 2, KS, KS) 7x7 conv weight (Conv2d(2, 1, 7), bias=False)
    gamma, beta, running_mean, running_var : (1,)  BatchNorm2d(1), eval mode
    returns: (N, 1, H, W)   sigmoid spatial gate
    """
    N, C, H, W = x.shape
    KS = weight.shape[-1]
    HW = H * W

    # Fold eval-mode BN into the conv: scale into the weights, shift is a scalar.
    scale = gamma / jnp.sqrt(running_var + eps)                        # (1,)
    w_folded = (weight[0] * scale[0]).reshape(2, KS * KS).astype(jnp.float32)
    shift = (beta - running_mean * scale).astype(jnp.float32)          # (1,)

    # NCHW -> (N, C, H*W): contiguous (free) reshape; spatial goes on the lanes.
    x_flat = x.reshape(N, C, HW).astype(jnp.float32)

    out = pl.pallas_call(
        functools.partial(_spatial_gate_kernel, H=H, W=W, KS=KS),
        out_shape=jax.ShapeDtypeStruct((N, 1, HW), jnp.float32),
        grid=(N,),
        in_specs=[
            pl.BlockSpec(memory_space=pltpu.MemorySpace.SMEM),   # folded weights
            pl.BlockSpec(memory_space=pltpu.MemorySpace.SMEM),   # folded BN shift
            pl.BlockSpec((1, C, HW), lambda n: (n, 0, 0)),       # one image / step
        ],
        out_specs=pl.BlockSpec((1, 1, HW), lambda n: (n, 0, 0)),
        compiler_params=pltpu.CompilerParams(
            dimension_semantics=("parallel",)),                  # v7x: both TCs busy
    )(w_folded, shift, x_flat)

    return out.reshape(N, 1, H, W)


def _reference(x, weight, gamma, beta, running_mean, running_var, eps=1e-5):
    """Pure-JAX reference (lax conv) for correctness checking."""
    mx = jnp.max(x, axis=1, keepdims=True)
    mn = jnp.mean(x, axis=1, keepdims=True)
    pooled = jnp.concatenate([mx, mn], axis=1)                     # (N, 2, H, W)
    pad = weight.shape[-1] // 2
    y = jax.lax.conv_general_dilated(
        pooled, weight, window_strides=(1, 1),
        padding=((pad, pad), (pad, pad)),
        dimension_numbers=("NCHW", "OIHW", "NCHW"))
    scale = gamma / jnp.sqrt(running_var + eps)
    shift = beta - running_mean * scale
    y = y * scale[None, :, None, None] + shift[None, :, None, None]
    return jax.nn.sigmoid(y)


if __name__ == "__main__":
    key = jax.random.PRNGKey(0)
    k_x, k_w, k_g, k_b, k_m, k_v = jax.random.split(key, 6)

    N, C, H, W = 2, 4, 16, 16
    KS = 7

    x = jax.random.normal(k_x, (N, C, H, W), jnp.float32)
    weight = jax.random.normal(k_w, (1, 2, KS, KS), jnp.float32) * 0.1
    gamma = 1.0 + 0.1 * jax.random.normal(k_g, (1,), jnp.float32)
    beta = 0.1 * jax.random.normal(k_b, (1,), jnp.float32)
    running_mean = 0.05 * jax.random.normal(k_m, (1,), jnp.float32)
    running_var = 1.0 + 0.1 * jax.random.uniform(k_v, (1,), jnp.float32)

    out = spatial_gate_forward(x, weight, gamma, beta, running_mean,
                               running_var)
    out = jax.block_until_ready(out)

    ref = _reference(x, weight, gamma, beta, running_mean, running_var)
    assert out.shape == (N, 1, H, W)
    assert jnp.allclose(out, ref, atol=1e-4, rtol=1e-4), "mismatch vs reference"

    print("KERNEL_OK")
</pallas_src>

<mosaic_0001>
module attributes {stable_mosaic.version = 11 : i64} {
  func.func @_spatial_gate_kernel(%arg0: i32, %arg1: memref<2x49xf32, #tpu.memory_space<smem>>, %arg2: memref<1xf32, #tpu.memory_space<smem>>, %arg3: memref<1x4x256xf32, #tpu.memory_space<vmem>>, %arg4: memref<1x1x256xf32, #tpu.memory_space<vmem>>) attributes {dimension_semantics = [#tpu.dimension_semantics<parallel>], iteration_bounds = array<i64: 2>, scalar_prefetch = 0 : i64, scratch_operands = 0 : i64, tpu.core_type = #tpu.core_type<tc>, window_params = [{transform_indices = @transform_0, window_bounds = array<i64: 2, 49>}, {transform_indices = @transform_1, window_bounds = array<i64: 1>}, {transform_indices = @transform_2, window_bounds = array<i64: 1, 4, 256>}, {transform_indices = @transform_3, window_bounds = array<i64: 1, 1, 256>}]} {
    %c0 = arith.constant 0 : index
    %c0_0 = arith.constant 0 : index
    %c0_1 = arith.constant 0 : index
    %0 = vector.load %arg3[%c0, %c0_0, %c0_1] : memref<1x4x256xf32, #tpu.memory_space<vmem>>, vector<1x4x256xf32>
    %1 = vector.shape_cast %0 : vector<1x4x256xf32> to vector<4x256xf32>
    %cst = arith.constant dense<0xFF800000> : vector<256xf32>
    %2 = vector.multi_reduction <maximumf>, %1, %cst [0] : vector<4x256xf32> to vector<256xf32>
    %3 = vector.shape_cast %2 : vector<256xf32> to vector<1x256xf32>
    %cst_2 = arith.constant dense<0.000000e+00> : vector<256xf32>
    %4 = vector.multi_reduction <add>, %1, %cst_2 [0] : vector<4x256xf32> to vector<256xf32>
    %5 = vector.shape_cast %4 : vector<256xf32> to vector<1x256xf32>
    %cst_3 = arith.constant 2.500000e-01 : f32
    %6 = vector.broadcast %cst_3 : f32 to vector<1x256xf32>
    %7 = arith.mulf %5, %6 : vector<1x256xf32>
    %cst_4 = arith.constant 0.000000e+00 : f32
    %8 = vector.broadcast %cst_4 : f32 to vector<1x128xf32>
    %9 = tpu.concatenate %8, %3, %8 in 1 : vector<1x128xf32>, vector<1x256xf32>, vector<1x128xf32> -> vector<1x512xf32>
    %10 = tpu.concatenate %8, %7, %8 in 1 : vector<1x128xf32>, vector<1x256xf32>, vector<1x128xf32> -> vector<1x512xf32>
    %11 = tpu.iota {dimensions = array<i32: 1>} : vector<1x256xi32>
    %c16_i32 = arith.constant 16 : i32
    %c0_i32 = arith.constant 0 : i32
    %12 = arith.cmpi eq, %c16_i32, %c0_i32 : i32
    %c1_i32 = arith.constant 1 : i32
    %13 = arith.select %12, %c1_i32, %c16_i32 : i32
    %14 = vector.broadcast %13 : i32 to vector<1x256xi32>
    %15 = arith.remsi %11, %14 : vector<1x256xi32>
    %c0_i32_5 = arith.constant 0 : i32
    %16 = vector.broadcast %c0_i32_5 : i32 to vector<1x256xi32>
    %17 = arith.cmpi ne, %15, %16 : vector<1x256xi32>
    %c0_i32_6 = arith.constant 0 : i32
    %18 = vector.broadcast %c0_i32_6 : i32 to vector<1x256xi32>
    %19 = arith.cmpi slt, %15, %18 : vector<1x256xi32>
    %c0_i32_7 = arith.constant 0 : i32
    %20 = arith.cmpi slt, %13, %c0_i32_7 : i32
    %21 = vector.broadcast %20 : i1 to vector<1x256xi1>
    %22 = vector.broadcast %21 : vector<1x256xi1> to vector<1x256xi1>
    %23 = arith.xori %19, %22 : vector<1x256xi1>
    %24 = arith.andi %23, %17 : vector<1x256xi1>
    %25 = vector.broadcast %13 : i32 to vector<1x256xi32>
    %26 = arith.addi %15, %25 : vector<1x256xi32>
    %27 = arith.select %24, %26, %15 : vector<1x256xi1>, vector<1x256xi32>
    %c0_8 = arith.constant 0 : index
    %28 = memref.load %arg2[%c0_8] : memref<1xf32, #tpu.memory_space<smem>>
    %29 = vector.broadcast %28 : f32 to vector<1x256xf32>
    %c-3_i32 = arith.constant -3 : i32
    %30 = vector.broadcast %c-3_i32 : i32 to vector<1x256xi32>
    %31 = arith.addi %27, %30 : vector<1x256xi32>
    %c0_i32_9 = arith.constant 0 : i32
    %32 = vector.broadcast %c0_i32_9 : i32 to vector<1x256xi32>
    %33 = arith.cmpi sge, %31, %32 : vector<1x256xi32>
    %c-3_i32_10 = arith.constant -3 : i32
    %34 = vector.broadcast %c-3_i32_10 : i32 to vector<1x256xi32>
    %35 = arith.addi %27, %34 : vector<1x256xi32>
    %c16_i32_11 = arith.constant 16 : i32
    %36 = vector.broadcast %c16_i32_11 : i32 to vector<1x256xi32>
    %37 = arith.cmpi slt, %35, %36 : vector<1x256xi32>
    %38 = arith.andi %33, %37 : vector<1x256xi1>
    %c0_12 = arith.constant 0 : index
    %c0_13 = arith.constant 0 : index
    %39 = memref.load %arg1[%c0_12, %c0_13] : memref<2x49xf32, #tpu.memory_space<smem>>
    %40 = vector.extract_strided_slice %9 {offsets = [0, 77], sizes = [1, 256], strides = [1, 1]} : vector<1x512xf32> to vector<1x256xf32>
    %41 = vector.broadcast %39 : f32 to vector<1x256xf32>
    %42 = arith.mulf %41, %40 : vector<1x256xf32>
    %c1 = arith.constant 1 : index
    %c0_14 = arith.constant 0 : index
    %43 = memref.load %arg1[%c1, %c0_14] : memref<2x49xf32, #tpu.memory_space<smem>>
    %44 = vector.extract_strided_slice %10 {offsets = [0, 77], sizes = [1, 256], strides = [1, 1]} : vector<1x512xf32> to vector<1x256xf32>
    %45 = vector.broadcast %43 : f32 to vector<1x256xf32>
    %46 = arith.mulf %45, %44 : vector<1x256xf32>
    %47 = arith.addf %42, %46 : vector<1x256xf32>
    %c0_15 = arith.constant 0 : index
    %c7 = arith.constant 7 : index
    %48 = memref.load %arg1[%c0_15, %c7] : memref<2x49xf32, #tpu.memory_space<smem>>
    %49 = vector.extract_strided_slice %9 {offsets = [0, 93], sizes = [1, 256], strides = [1, 1]} : vector<1x512xf32> to vector<1x256xf32>
    %50 = vector.broadcast %48 : f32 to vector<1x256xf32>
    %51 = arith.mulf %50, %49 : vector<1x256xf32>
    %c1_16 = arith.constant 1 : index
    %c7_17 = arith.constant 7 : index
    %52 = memref.load %arg1[%c1_16, %c7_17] : memref<2x49xf32, #tpu.memory_space<smem>>
    %53 = vector.extract_strided_slice %10 {offsets = [0, 93], sizes = [1, 256], strides = [1, 1]} : vector<1x512xf32> to vector<1x256xf32>
    %54 = vector.broadcast %52 : f32 to vector<1x256xf32>
    %55 = arith.mulf %54, %53 : vector<1x256xf32>
    %56 = arith.addf %51, %55 : vector<1x256xf32>
    %57 = arith.addf %47, %56 : vector<1x256xf32>
    %c0_18 = arith.constant 0 : index
    %c14 = arith.constant 14 : index
    %58 = memref.load %arg1[%c0_18, %c14] : memref<2x49xf32, #tpu.memory_space<smem>>
    %59 = vector.extract_strided_slice %9 {offsets = [0, 109], sizes = [1, 256], strides = [1, 1]} : vector<1x512xf32> to vector<1x256xf32>
    %60 = vector.broadcast %58 : f32 to vector<1x256xf32>
    %61 = arith.mulf %60, %59 : vector<1x256xf32>
    %c1_19 = arith.constant 1 : index
    %c14_20 = arith.constant 14 : index
    %62 = memref.load %arg1[%c1_19, %c14_20] : memref<2x49xf32, #tpu.memory_space<smem>>
    %63 = vector.extract_strided_slice %10 {offsets = [0, 109], sizes = [1, 256], strides = [1, 1]} : vector<1x512xf32> to vector<1x256xf32>
    %64 = vector.broadcast %62 : f32 to vector<1x256xf32>
    %65 = arith.mulf %64, %63 : vector<1x256xf32>
    %66 = arith.addf %61, %65 : vector<1x256xf32>
    %67 = arith.addf %57, %66 : vector<1x256xf32>
    %c0_21 = arith.constant 0 : index
    %c21 = arith.constant 21 : index
    %68 = memref.load %arg1[%c0_21, %c21] : memref<2x49xf32, #tpu.memory_space<smem>>
    %69 = vector.extract_strided_slice %9 {offsets = [0, 125], sizes = [1, 256], strides = [1, 1]} : vector<1x512xf32> to vector<1x256xf32>
    %70 = vector.broadcast %68 : f32 to vector<1x256xf32>
    %71 = arith.mulf %70, %69 : vector<1x256xf32>
    %c1_22 = arith.constant 1 : index
    %c21_23 = arith.constant 21 : index
    %72 = memref.load %arg1[%c1_22, %c21_23] : memref<2x49xf32, #tpu.memory_space<smem>>
    %73 = vector.extract_strided_slice %10 {offsets = [0, 125], sizes = [1, 256], strides = [1, 1]} : vector<1x512xf32> to vector<1x256xf32>
    %74 = vector.broadcast %72 : f32 to vector<1x256xf32>
    %75 = arith.mulf %74, %73 : vector<1x256xf32>
    %76 = arith.addf %71, %75 : vector<1x256xf32>
    %77 = arith.addf %67, %76 : vector<1x256xf32>
    %c0_24 = arith.constant 0 : index
    %c28 = arith.constant 28 : index
    %78 = memref.load %arg1[%c0_24, %c28] : memref<2x49xf32, #tpu.memory_space<smem>>
    %79 = vector.extract_strided_slice %9 {offsets = [0, 141], sizes = [1, 256], strides = [1, 1]} : vector<1x512xf32> to vector<1x256xf32>
    %80 = vector.broadcast %78 : f32 to vector<1x256xf32>
    %81 = arith.mulf %80, %79 : vector<1x256xf32>
    %c1_25 = arith.constant 1 : index
    %c28_26 = arith.constant 28 : index
    %82 = memref.load %arg1[%c1_25, %c28_26] : memref<2x49xf32, #tpu.memory_space<smem>>
    %83 = vector.extract_strided_slice %10 {offsets = [0, 141], sizes = [1, 256], strides = [1, 1]} : vector<1x512xf32> to vector<1x256xf32>
    %84 = vector.broadcast %82 : f32 to vector<1x256xf32>
    %85 = arith.mulf %84, %83 : vector<1x256xf32>
    %86 = arith.addf %81, %85 : vector<1x256xf32>
    %87 = arith.addf %77, %86 : vector<1x256xf32>
    %c0_27 = arith.constant 0 : index
    %c35 = arith.constant 35 : index
    %88 = memref.load %arg1[%c0_27, %c35] : memref<2x49xf32, #tpu.memory_space<smem>>
    %89 = vector.extract_strided_slice %9 {offsets = [0, 157], sizes = [1, 256], strides = [1, 1]} : vector<1x512xf32> to vector<1x256xf32>
    %90 = vector.broadcast %88 : f32 to vector<1x256xf32>
    %91 = arith.mulf %90, %89 : vector<1x256xf32>
    %c1_28 = arith.constant 1 : index
    %c35_29 = arith.constant 35 : index
    %92 = memref.load %arg1[%c1_28, %c35_29] : memref<2x49xf32, #tpu.memory_space<smem>>
    %93 = vector.extract_strided_slice %10 {offsets = [0, 157], sizes = [1, 256], strides = [1, 1]} : vector<1x512xf32> to vector<1x256xf32>
    %94 = vector.broadcast %92 : f32 to vector<1x256xf32>
    %95 = arith.mulf %94, %93 : vector<1x256xf32>
    %96 = arith.addf %91, %95 : vector<1x256xf32>
    %97 = arith.addf %87, %96 : vector<1x256xf32>
    %c0_30 = arith.constant 0 : index
    %c42 = arith.constant 42 : index
    %98 = memref.load %arg1[%c0_30, %c42] : memref<2x49xf32, #tpu.memory_space<smem>>
    %99 = vector.extract_strided_slice %9 {offsets = [0, 173], sizes = [1, 256], strides = [1, 1]} : vector<1x512xf32> to vector<1x256xf32>
    %100 = vector.broadcast %98 : f32 to vector<1x256xf32>
    %101 = arith.mulf %100, %99 : vector<1x256xf32>
    %c1_31 = arith.constant 1 : index
    %c42_32 = arith.constant 42 : index
    %102 = memref.load %arg1[%c1_31, %c42_32] : memref<2x49xf32, #tpu.memory_space<smem>>
    %103 = vector.extract_strided_slice %10 {offsets = [0, 173], sizes = [1, 256], strides = [1, 1]} : vector<1x512xf32> to vector<1x256xf32>
    %104 = vector.broadcast %102 : f32 to vector<1x256xf32>
    %105 = arith.mulf %104, %103 : vector<1x256xf32>
    %106 = arith.addf %101, %105 : vector<1x256xf32>
    %107 = arith.addf %97, %106 : vector<1x256xf32>
    %cst_33 = arith.constant 0.000000e+00 : f32
    %108 = vector.broadcast %cst_33 : f32 to vector<1x256xf32>
    %109 = arith.select %38, %107, %108 : vector<1x256xi1>, vector<1x256xf32>
    %110 = arith.addf %29, %109 : vector<1x256xf32>
    %c-2_i32 = arith.constant -2 : i32
    %111 = vector.broadcast %c-2_i32 : i32 to vector<1x256xi32>
    %112 = arith.addi %27, %111 : vector<1x256xi32>
    %c0_i32_34 = arith.constant 0 : i32
    %113 = vector.broadcast %c0_i32_34 : i32 to vector<1x256xi32>
    %114 = arith.cmpi sge, %112, %113 : vector<1x256xi32>
    %c-2_i32_35 = arith.constant -2 : i32
    %115 = vector.broadcast %c-2_i32_35 : i32 to vector<1x256xi32>
    %116 = arith.addi %27, %115 : vector<1x256xi32>
    %c16_i32_36 = arith.constant 16 : i32
    %117 = vector.broadcast %c16_i32_36 : i32 to vector<1x256xi32>
    %118 = arith.cmpi slt, %116, %117 : vector<1x256xi32>
    %119 = arith.andi %114, %118 : vector<1x256xi1>
    %c0_37 = arith.constant 0 : index
    %c1_38 = arith.constant 1 : index
    %120 = memref.load %arg1[%c0_37, %c1_38] : memref<2x49xf32, #tpu.memory_space<smem>>
    %121 = vector.extract_strided_slice %9 {offsets = [0, 78], sizes = [1, 256], strides = [1, 1]} : vector<1x512xf32> to vector<1x256xf32>
    %122 = vector.broadcast %120 : f32 to vector<1x256xf32>
    %123 = arith.mulf %122, %121 : vector<1x256xf32>
    %c1_39 = arith.constant 1 : index
    %c1_40 = arith.constant 1 : index
    %124 = memref.load %arg1[%c1_39, %c1_40] : memref<2x49xf32, #tpu.memory_space<smem>>
    %125 = vector.extract_strided_slice %10 {offsets = [0, 78], sizes = [1, 256], strides = [1, 1]} : vector<1x512xf32> to vector<1x256xf32>
    %126 = vector.broadcast %124 : f32 to vector<1x256xf32>
    %127 = arith.mulf %126, %125 : vector<1x256xf32>
    %128 = arith.addf %123, %127 : vector<1x256xf32>
    %c0_41 = arith.constant 0 : index
    %c8 = arith.constant 8 : index
    %129 = memref.load %arg1[%c0_41, %c8] : memref<2x49xf32, #tpu.memory_space<smem>>
    %130 = vector.extract_strided_slice %9 {offsets = [0, 94], sizes = [1, 256], strides = [1, 1]} : vector<1x512xf32> to vector<1x256xf32>
    %131 = vector.broadcast %129 : f32 to vector<1x256xf32>
    %132 = arith.mulf %131, %130 : vector<1x256xf32>
    %c1_42 = arith.constant 1 : index
    %c8_43 = arith.constant 8 : index
    %133 = memref.load %arg1[%c1_42, %c8_43] : memref<2x49xf32, #tpu.memory_space<smem>>
    %134 = vector.extract_strided_slice %10 {offsets = [0, 94], sizes = [1, 256], strides = [1, 1]} : vector<1x512xf32> to vector<1x256xf32>
    %135 = vector.broadcast %133 : f32 to vector<1x256xf32>
    %136 = arith.mulf %135, %134 : vector<1x256xf32>
    %137 = arith.addf %132, %136 : vector<1x256xf32>
    %138 = arith.addf %128, %137 : vector<1x256xf32>
    %c0_44 = arith.constant 0 : index
    %c15 = arith.constant 15 : index
    %139 = memref.load %arg1[%c0_44, %c15] : memref<2x49xf32, #tpu.memory_space<smem>>
    %140 = vector.extract_strided_slice %9 {offsets = [0, 110], sizes = [1, 256], strides = [1, 1]} : vector<1x512xf32> to vector<1x256xf32>
    %141 = vector.broadcast %139 : f32 to vector<1x256xf32>
    %142 = arith.mulf %141, %140 : vector<1x256xf32>
    %c1_45 = arith.constant 1 : index
    %c15_46 = arith.constant 15 : index
    %143 = memref.load %arg1[%c1_45, %c15_46] : memref<2x49xf32, #tpu.memory_space<smem>>
    %144 = vector.extract_strided_slice %10 {offsets = [0, 110], sizes = [1, 256], strides = [1, 1]} : vector<1x512xf32> to vector<1x256xf32>
    %145 = vector.broadcast %143 : f32 to vector<1x256xf32>
    %146 = arith.mulf %145, %144 : vector<1x256xf32>
    %147 = arith.addf %142, %146 : vector<1x256xf32>
    %148 = arith.addf %138, %147 : vector<1x256xf32>
    %c0_47 = arith.constant 0 : index
    %c22 = arith.constant 22 : index
    %149 = memref.load %arg1[%c0_47, %c22] : memref<2x49xf32, #tpu.memory_space<smem>>
    %150 = vector.extract_strided_slice %9 {offsets = [0, 126], sizes = [1, 256], strides = [1, 1]} : vector<1x512xf32> to vector<1x256xf32>
    %151 = vector.broadcast %149 : f32 to vector<1x256xf32>
    %152 = arith.mulf %151, %150 : vector<1x256xf32>
    %c1_48 = arith.constant 1 : index
    %c22_49 = arith.constant 22 : index
    %153 = memref.load %arg1[%c1_48, %c22_49] : memref<2x49xf32, #tpu.memory_space<smem>>
    %154 = vector.extract_strided_slice %10 {offsets = [0, 126], sizes = [1, 256], strides = [1, 1]} : vector<1x512xf32> to vector<1x256xf32>
    %155 = vector.broadcast %153 : f32 to vector<1x256xf32>
    %156 = arith.mulf %155, %154 : vector<1x256xf32>
    %157 = arith.addf %152, %156 : vector<1x256xf32>
    %158 = arith.addf %148, %157 : vector<1x256xf32>
    %c0_50 = arith.constant 0 : index
    %c29 = arith.constant 29 : index
    %159 = memref.load %arg1[%c0_50, %c29] : memref<2x49xf32, #tpu.memory_space<smem>>
    %160 = vector.extract_strided_slice %9 {offsets = [0, 142], sizes = [1, 256], strides = [1, 1]} : vector<1x512xf32> to vector<1x256xf32>
    %161 = vector.broadcast %159 : f32 to vector<1x256xf32>
    %162 = arith.mulf %161, %160 : vector<1x256xf32>
    %c1_51 = arith.constant 1 : index
    %c29_52 = arith.constant 29 : index
    %163 = memref.load %arg1[%c1_51, %c29_52] : memref<2x49xf32, #tpu.memory_space<smem>>
    %164 = vector.extract_strided_slice %10 {offsets = [0, 142], sizes = [1, 256], strides = [1, 1]} : vector<1x512xf32> to vector<1x256xf32>
    %165 = vector.broadcast %163 : f32 to vector<1x256xf32>
    %166 = arith.mulf %165, %164 : vector<1x256xf32>
    %167 = arith.addf %162, %166 : vector<1x256xf32>
    %168 = arith.addf %158, %167 : vector<1x256xf32>
    %c0_53 = arith.constant 0 : index
    %c36 = arith.constant 36 : index
    %169 = memref.load %arg1[%c0_53, %c36] : memref<2x49xf32, #tpu.memory_space<smem>>
    %170 = vector.extract_strided_slice %9 {offsets = [0, 158], sizes = [1, 256], strides = [1, 1]} : vector<1x512xf32> to vector<1x256xf32>
    %171 = vector.broadcast %169 : f32 to vector<1x256xf32>
    %172 = arith.mulf %171, %170 : vector<1x256xf32>
    %c1_54 = arith.constant 1 : index
    %c36_55 = arith.constant 36 : index
    %173 = memref.load %arg1[%c1_54, %c36_55] : memref<2x49xf32, #tpu.memory_space<smem>>
    %174 = vector.extract_strided_slice %10 {offsets = [0, 158], sizes = [1, 256], strides = [1, 1]} : vector<1x512xf32> to vector<1x256xf32>
    %175 = vector.broadcast %173 : f32 to vector<1x256xf32>
    %176 = arith.mulf %175, %174 : vector<1x256xf32>
    %177 = arith.addf %172, %176 : vector<1x256xf32>
    %178 = arith.addf %168, %177 : vector<1x256xf32>
    %c0_56 = arith.constant 0 : index
    %c43 = arith.constant 43 : index
    %179 = memref.load %arg1[%c0_56, %c43] : memref<2x49xf32, #tpu.memory_space<smem>>
    %180 = vector.extract_strided_slice %9 {offsets = [0, 174], sizes = [1, 256], strides = [1, 1]} : vector<1x512xf32> to vector<1x256xf32>
    %181 = vector.broadcast %179 : f32 to vector<1x256xf32>
    %182 = arith.mulf %181, %180 : vector<1x256xf32>
    %c1_57 = arith.constant 1 : index
    %c43_58 = arith.constant 43 : index
    %183 = memref.load %arg1[%c1_57, %c43_58] : memref<2x49xf32, #tpu.memory_space<smem>>
    %184 = vector.extract_strided_slice %10 {offsets = [0, 174], sizes = [1, 256], strides = [1, 1]} : vector<1x512xf32> to vector<1x256xf32>
    %185 = vector.broadcast %183 : f32 to vector<1x256xf32>
    %186 = arith.mulf %185, %184 : vector<1x256xf32>
    %187 = arith.addf %182, %186 : vector<1x256xf32>
    %188 = arith.addf %178, %187 : vector<1x256xf32>
    %cst_59 = arith.constant 0.000000e+00 : f32
    %189 = vector.broadcast %cst_59 : f32 to vector<1x256xf32>
    %190 = arith.select %119, %188, %189 : vector<1x256xi1>, vector<1x256xf32>
    %191 = arith.addf %110, %190 : vector<1x256xf32>
    %c-1_i32 = arith.constant -1 : i32
    %192 = vector.broadcast %c-1_i32 : i32 to vector<1x256xi32>
    %193 = arith.addi %27, %192 : vector<1x256xi32>
    %c0_i32_60 = arith.constant 0 : i32
    %194 = vector.broadcast %c0_i32_60 : i32 to vector<1x256xi32>
    %195 = arith.cmpi sge, %193, %194 : vector<1x256xi32>
    %c-1_i32_61 = arith.constant -1 : i32
    %196 = vector.broadcast %c-1_i32_61 : i32 to vector<1x256xi32>
    %197 = arith.addi %27, %196 : vector<1x256xi32>
    %c16_i32_62 = arith.constant 16 : i32
    %198 = vector.broadcast %c16_i32_62 : i32 to vector<1x256xi32>
    %199 = arith.cmpi slt, %197, %198 : vector<1x256xi32>
    %200 = arith.andi %195, %199 : vector<1x256xi1>
    %c0_63 = arith.constant 0 : index
    %c2 = arith.constant 2 : index
    %201 = memref.load %arg1[%c0_63, %c2] : memref<2x49xf32, #tpu.memory_space<smem>>
    %202 = vector.extract_strided_slice %9 {offsets = [0, 79], sizes = [1, 256], strides = [1, 1]} : vector<1x512xf32> to vector<1x256xf32>
    %203 = vector.broadcast %201 : f32 to vector<1x256xf32>
    %204 = arith.mulf %203, %202 : vector<1x256xf32>
    %c1_64 = arith.constant 1 : index
    %c2_65 = arith.constant 2 : index
    %205 = memref.load %arg1[%c1_64, %c2_65] : memref<2x49xf32, #tpu.memory_space<smem>>
    %206 = vector.extract_strided_slice %10 {offsets = [0, 79], sizes = [1, 256], strides = [1, 1]} : vector<1x512xf32> to vector<1x256xf32>
    %207 = vector.broadcast %205 : f32 to vector<1x256xf32>
    %208 = arith.mulf %207, %206 : vector<1x256xf32>
    %209 = arith.addf %204, %208 : vector<1x256xf32>
    %c0_66 = arith.constant 0 : index
    %c9 = arith.constant 9 : index
    %210 = memref.load %arg1[%c0_66, %c9] : memref<2x49xf32, #tpu.memory_space<smem>>
    %211 = vector.extract_strided_slice %9 {offsets = [0, 95], sizes = [1, 256], strides = [1, 1]} : vector<1x512xf32> to vector<1x256xf32>
    %212 = vector.broadcast %210 : f32 to vector<1x256xf32>
    %213 = arith.mulf %212, %211 : vector<1x256xf32>
    %c1_67 = arith.constant 1 : index
    %c9_68 = arith.constant 9 : index
    %214 = memref.load %arg1[%c1_67, %c9_68] : memref<2x49xf32, #tpu.memory_space<smem>>
    %215 = vector.extract_strided_slice %10 {offsets = [0, 95], sizes = [1, 256], strides = [1, 1]} : vector<1x512xf32> to vector<1x256xf32>
    %216 = vector.broadcast %214 : f32 to vector<1x256xf32>
    %217 = arith.mulf %216, %215 : vector<1x256xf32>
    %218 = arith.addf %213, %217 : vector<1x256xf32>
    %219 = arith.addf %209, %218 : vector<1x256xf32>
    %c0_69 = arith.constant 0 : index
    %c16 = arith.constant 16 : index
    %220 = memref.load %arg1[%c0_69, %c16] : memref<2x49xf32, #tpu.memory_space<smem>>
    %221 = vector.extract_strided_slice %9 {offsets = [0, 111], sizes = [1, 256], strides = [1, 1]} : vector<1x512xf32> to vector<1x256xf32>
    %222 = vector.broadcast %220 : f32 to vector<1x256xf32>
    %223 = arith.mulf %222, %221 : vector<1x256xf32>
    %c1_70 = arith.constant 1 : index
    %c16_71 = arith.constant 16 : index
    %224 = memref.load %arg1[%c1_70, %c16_71] : memref<2x49xf32, #tpu.memory_space<smem>>
    %225 = vector.extract_strided_slice %10 {offsets = [0, 111], sizes = [1, 256], strides = [1, 1]} : vector<1x512xf32> to vector<1x256xf32>
    %226 = vector.broadcast %224 : f32 to vector<1x256xf32>
    %227 = arith.mulf %226, %225 : vector<1x256xf32>
    %228 = arith.addf %223, %227 : vector<1x256xf32>
    %229 = arith.addf %219, %228 : vector<1x256xf32>
    %c0_72 = arith.constant 0 : index
    %c23 = arith.constant 23 : index
    %230 = memref.load %arg1[%c0_72, %c23] : memref<2x49xf32, #tpu.memory_space<smem>>
    %231 = vector.extract_strided_slice %9 {offsets = [0, 127], sizes = [1, 256], strides = [1, 1]} : vector<1x512xf32> to vector<1x256xf32>
    %232 = vector.broadcast %230 : f32 to vector<1x256xf32>
    %233 = arith.mulf %232, %231 : vector<1x256xf32>
    %c1_73 = arith.constant 1 : index
    %c23_74 = arith.constant 23 : index
    %234 = memref.load %arg1[%c1_73, %c23_74] : memref<2x49xf32, #tpu.memory_space<smem>>
    %235 = vector.extract_strided_slice %10 {offsets = [0, 127], sizes = [1, 256], strides = [1, 1]} : vector<1x512xf32> to vector<1x256xf32>
    %236 = vector.broadcast %234 : f32 to vector<1x256xf32>
    %237 = arith.mulf %236, %235 : vector<1x256xf32>
    %238 = arith.addf %233, %237 : vector<1x256xf32>
    %239 = arith.addf %229, %238 : vector<1x256xf32>
    %c0_75 = arith.constant 0 : index
    %c30 = arith.constant 30 : index
    %240 = memref.load %arg1[%c0_75, %c30] : memref<2x49xf32, #tpu.memory_space<smem>>
    %241 = vector.extract_strided_slice %9 {offsets = [0, 143], sizes = [1, 256], strides = [1, 1]} : vector<1x512xf32> to vector<1x256xf32>
    %242 = vector.broadcast %240 : f32 to vector<1x256xf32>
    %243 = arith.mulf %242, %241 : vector<1x256xf32>
    %c1_76 = arith.constant 1 : index
    %c30_77 = arith.constant 30 : index
    %244 = memref.load %arg1[%c1_76, %c30_77] : memref<2x49xf32, #tpu.memory_space<smem>>
    %245 = vector.extract_strided_slice %10 {offsets = [0, 143], sizes = [1, 256], strides = [1, 1]} : vector<1x512xf32> to vector<1x256xf32>
    %246 = vector.broadcast %244 : f32 to vector<1x256xf32>
    %247 = arith.mulf %246, %245 : vector<1x256xf32>
    %248 = arith.addf %243, %247 : vector<1x256xf32>
    %249 = arith.addf %239, %248 : vector<1x256xf32>
    %c0_78 = arith.constant 0 : index
    %c37 = arith.constant 37 : index
    %250 = memref.load %arg1[%c0_78, %c37] : memref<2x49xf32, #tpu.memory_space<smem>>
    %251 = vector.extract_strided_slice %9 {offsets = [0, 159], sizes = [1, 256], strides = [1, 1]} : vector<1x512xf32> to vector<1x256xf32>
    %252 = vector.broadcast %250 : f32 to vector<1x256xf32>
    %253 = arith.mulf %252, %251 : vector<1x256xf32>
    %c1_79 = arith.constant 1 : index
    %c37_80 = arith.constant 37 : index
    %254 = memref.load %arg1[%c1_79, %c37_80] : memref<2x49xf32, #tpu.memory_space<smem>>
    %255 = vector.extract_strided_slice %10 {offsets = [0, 159], sizes = [1, 256], strides = [1, 1]} : vector<1x512xf32> to vector<1x256xf32>
    %256 = vector.broadcast %254 : f32 to vector<1x256xf32>
    %257 = arith.mulf %256, %255 : vector<1x256xf32>
    %258 = arith.addf %253, %257 : vector<1x256xf32>
    %259 = arith.addf %249, %258 : vector<1x256xf32>
    %c0_81 = arith.constant 0 : index
    %c44 = arith.constant 44 : index
    %260 = memref.load %arg1[%c0_81, %c44] : memref<2x49xf32, #tpu.memory_space<smem>>
    %261 = vector.extract_strided_slice %9 {offsets = [0, 175], sizes = [1, 256], strides = [1, 1]} : vector<1x512xf32> to vector<1x256xf32>
    %262 = vector.broadcast %260 : f32 to vector<1x256xf32>
    %263 = arith.mulf %262, %261 : vector<1x256xf32>
    %c1_82 = arith.constant 1 : index
    %c44_83 = arith.constant 44 : index
    %264 = memref.load %arg1[%c1_82, %c44_83] : memref<2x49xf32, #tpu.memory_space<smem>>
    %265 = vector.extract_strided_slice %10 {offsets = [0, 175], sizes = [1, 256], strides = [1, 1]} : vector<1x512xf32> to vector<1x256xf32>
    %266 = vector.broadcast %264 : f32 to vector<1x256xf32>
    %267 = arith.mulf %266, %265 : vector<1x256xf32>
    %268 = arith.addf %263, %267 : vector<1x256xf32>
    %269 = arith.addf %259, %268 : vector<1x256xf32>
    %cst_84 = arith.constant 0.000000e+00 : f32
    %270 = vector.broadcast %cst_84 : f32 to vector<1x256xf32>
    %271 = arith.select %200, %269, %270 : vector<1x256xi1>, vector<1x256xf32>
    %272 = arith.addf %191, %271 : vector<1x256xf32>
    %c0_i32_85 = arith.constant 0 : i32
    %273 = vector.broadcast %c0_i32_85 : i32 to vector<1x256xi32>
    %274 = arith.addi %27, %273 : vector<1x256xi32>
    %c0_i32_86 = arith.constant 0 : i32
    %275 = vector.broadcast %c0_i32_86 : i32 to vector<1x256xi32>
    %276 = arith.cmpi sge, %274, %275 : vector<1x256xi32>
    %c0_i32_87 = arith.constant 0 : i32
    %277 = vector.broadcast %c0_i32_87 : i32 to vector<1x256xi32>
    %278 = arith.addi %27, %277 : vector<1x256xi32>
    %c16_i32_88 = arith.constant 16 : i32
    %279 = vector.broadcast %c16_i32_88 : i32 to vector<1x256xi32>
    %280 = arith.cmpi slt, %278, %279 : vector<1x256xi32>
    %281 = arith.andi %276, %280 : vector<1x256xi1>
    %c0_89 = arith.constant 0 : index
    %c3 = arith.constant 3 : index
    %282 = memref.load %arg1[%c0_89, %c3] : memref<2x49xf32, #tpu.memory_space<smem>>
    %283 = vector.extract_strided_slice %9 {offsets = [0, 80], sizes = [1, 256], strides = [1, 1]} : vector<1x512xf32> to vector<1x256xf32>
    %284 = vector.broadcast %282 : f32 to vector<1x256xf32>
    %285 = arith.mulf %284, %283 : vector<1x256xf32>
    %c1_90 = arith.constant 1 : index
    %c3_91 = arith.constant 3 : index
    %286 = memref.load %arg1[%c1_90, %c3_91] : memref<2x49xf32, #tpu.memory_space<smem>>
    %287 = vector.extract_strided_slice %10 {offsets = [0, 80], sizes = [1, 256], strides = [1, 1]} : vector<1x512xf32> to vector<1x256xf32>
    %288 = vector.broadcast %286 : f32 to vector<1x256xf32>
    %289 = arith.mulf %288, %287 : vector<1x256xf32>
    %290 = arith.addf %285, %289 : vector<1x256xf32>
    %c0_92 = arith.constant 0 : index
    %c10 = arith.constant 10 : index
    %291 = memref.load %arg1[%c0_92, %c10] : memref<2x49xf32, #tpu.memory_space<smem>>
    %292 = vector.extract_strided_slice %9 {offsets = [0, 96], sizes = [1, 256], strides = [1, 1]} : vector<1x512xf32> to vector<1x256xf32>
    %293 = vector.broadcast %291 : f32 to vector<1x256xf32>
    %294 = arith.mulf %293, %292 : vector<1x256xf32>
    %c1_93 = arith.constant 1 : index
    %c10_94 = arith.constant 10 : index
    %295 = memref.load %arg1[%c1_93, %c10_94] : memref<2x49xf32, #tpu.memory_space<smem>>
    %296 = vector.extract_strided_slice %10 {offsets = [0, 96], sizes = [1, 256], strides = [1, 1]} : vector<1x512xf32> to vector<1x256xf32>
    %297 = vector.broadcast %295 : f32 to vector<1x256xf32>
    %298 = arith.mulf %297, %296 : vector<1x256xf32>
    %299 = arith.addf %294, %298 : vector<1x256xf32>
    %300 = arith.addf %290, %299 : vector<1x256xf32>
    %c0_95 = arith.constant 0 : index
    %c17 = arith.constant 17 : index
    %301 = memref.load %arg1[%c0_95, %c17] : memref<2x49xf32, #tpu.memory_space<smem>>
    %302 = vector.extract_strided_slice %9 {offsets = [0, 112], sizes = [1, 256], strides = [1, 1]} : vector<1x512xf32> to vector<1x256xf32>
    %303 = vector.broadcast %301 : f32 to vector<1x256xf32>
    %304 = arith.mulf %303, %302 : vector<1x256xf32>
    %c1_96 = arith.constant 1 : index
    %c17_97 = arith.constant 17 : index
    %305 = memref.load %arg1[%c1_96, %c17_97] : memref<2x49xf32, #tpu.memory_space<smem>>
    %306 = vector.extract_strided_slice %10 {offsets = [0, 112], sizes = [1, 256], strides = [1, 1]} : vector<1x512xf32> to vector<1x256xf32>
    %307 = vector.broadcast %305 : f32 to vector<1x256xf32>
    %308 = arith.mulf %307, %306 : vector<1x256xf32>
    %309 = arith.addf %304, %308 : vector<1x256xf32>
    %310 = arith.addf %300, %309 : vector<1x256xf32>
    %c0_98 = arith.constant 0 : index
    %c24 = arith.constant 24 : index
    %311 = memref.load %arg1[%c0_98, %c24] : memref<2x49xf32, #tpu.memory_space<smem>>
    %312 = vector.extract_strided_slice %9 {offsets = [0, 128], sizes = [1, 256], strides = [1, 1]} : vector<1x512xf32> to vector<1x256xf32>
    %313 = vector.broadcast %311 : f32 to vector<1x256xf32>
    %314 = arith.mulf %313, %312 : vector<1x256xf32>
    %c1_99 = arith.constant 1 : index
    %c24_100 = arith.constant 24 : index
    %315 = memref.load %arg1[%c1_99, %c24_100] : memref<2x49xf32, #tpu.memory_space<smem>>
    %316 = vector.extract_strided_slice %10 {offsets = [0, 128], sizes = [1, 256], strides = [1, 1]} : vector<1x512xf32> to vector<1x256xf32>
    %317 = vector.broadcast %315 : f32 to vector<1x256xf32>
    %318 = arith.mulf %317, %316 : vector<1x256xf32>
    %319 = arith.addf %314, %318 : vector<1x256xf32>
    %320 = arith.addf %310, %319 : vector<1x256xf32>
    %c0_101 = arith.constant 0 : index
    %c31 = arith.constant 31 : index
    %321 = memref.load %arg1[%c0_101, %c31] : memref<2x49xf32, #tpu.memory_space<smem>>
    %322 = vector.extract_strided_slice %9 {offsets = [0, 144], sizes = [1, 256], strides = [1, 1]} : vector<1x512xf32> to vector<1x256xf32>
    %323 = vector.broadcast %321 : f32 to vector<1x256xf32>
    %324 = arith.mulf %323, %322 : vector<1x256xf32>
    %c1_102 = arith.constant 1 : index
    %c31_103 = arith.constant 31 : index
    %325 = memref.load %arg1[%c1_102, %c31_103] : memref<2x49xf32, #tpu.memory_space<smem>>
    %326 = vector.extract_strided_slice %10 {offsets = [0, 144], sizes = [1, 256], strides = [1, 1]} : vector<1x512xf32> to vector<1x256xf32>
    %327 = vector.broadcast %325 : f32 to vector<1x256xf32>
    %328 = arith.mulf %327, %326 : vector<1x256xf32>
    %329 = arith.addf %324, %328 : vector<1x256xf32>
    %330 = arith.addf %320, %329 : vector<1x256xf32>
    %c0_104 = arith.constant 0 : index
    %c38 = arith.constant 38 : index
    %331 = memref.load %arg1[%c0_104, %c38] : memref<2x49xf32, #tpu.memory_space<smem>>
    %332 = vector.extract_strided_slice %9 {offsets = [0, 160], sizes = [1, 256], strides = [1, 1]} : vector<1x512xf32> to vector<1x256xf32>
    %333 = vector.broadcast %331 : f32 to vector<1x256xf32>
    %334 = arith.mulf %333, %332 : vector<1x256xf32>
    %c1_105 = arith.constant 1 : index
    %c38_106 = arith.constant 38 : index
    %335 = memref.load %arg1[%c1_105, %c38_106] : memref<2x49xf32, #tpu.memory_space<smem>>
    %336 = vector.extract_strided_slice %10 {offsets = [0, 160], sizes = [1, 256], strides = [1, 1]} : vector<1x512xf32> to vector<1x256xf32>
    %337 = vector.broadcast %335 : f32 to vector<1x256xf32>
    %338 = arith.mulf %337, %336 : vector<1x256xf32>
    %339 = arith.addf %334, %338 : vector<1x256xf32>
    %340 = arith.addf %330, %339 : vector<1x256xf32>
    %c0_107 = arith.constant 0 : index
    %c45 = arith.constant 45 : index
    %341 = memref.load %arg1[%c0_107, %c45] : memref<2x49xf32, #tpu.memory_space<smem>>
    %342 = vector.extract_strided_slice %9 {offsets = [0, 176], sizes = [1, 256], strides = [1, 1]} : vector<1x512xf32> to vector<1x256xf32>
    %343 = vector.broadcast %341 : f32 to vector<1x256xf32>
    %344 = arith.mulf %343, %342 : vector<1x256xf32>
    %c1_108 = arith.constant 1 : index
    %c45_109 = arith.constant 45 : index
    %345 = memref.load %arg1[%c1_108, %c45_109] : memref<2x49xf32, #tpu.memory_space<smem>>
    %346 = vector.extract_strided_slice %10 {offsets = [0, 176], sizes = [1, 256], strides = [1, 1]} : vector<1x512xf32> to vector<1x256xf32>
    %347 = vector.broadcast %345 : f32 to vector<1x256xf32>
    %348 = arith.mulf %347, %346 : vector<1x256xf32>
    %349 = arith.addf %344, %348 : vector<1x256xf32>
    %350 = arith.addf %340, %349 : vector<1x256xf32>
    %cst_110 = arith.constant 0.000000e+00 : f32
    %351 = vector.broadcast %cst_110 : f32 to vector<1x256xf32>
    %352 = arith.select %281, %350, %351 : vector<1x256xi1>, vector<1x256xf32>
    %353 = arith.addf %272, %352 : vector<1x256xf32>
    %c1_i32_111 = arith.constant 1 : i32
    %354 = vector.broadcast %c1_i32_111 : i32 to vector<1x256xi32>
    %355 = arith.addi %27, %354 : vector<1x256xi32>
    %c0_i32_112 = arith.constant 0 : i32
    %356 = vector.broadcast %c0_i32_112 : i32 to vector<1x256xi32>
    %357 = arith.cmpi sge, %355, %356 : vector<1x256xi32>
    %c1_i32_113 = arith.constant 1 : i32
    %358 = vector.broadcast %c1_i32_113 : i32 to vector<1x256xi32>
    %359 = arith.addi %27, %358 : vector<1x256xi32>
    %c16_i32_114 = arith.constant 16 : i32
    %360 = vector.broadcast %c16_i32_114 : i32 to vector<1x256xi32>
    %361 = arith.cmpi slt, %359, %360 : vector<1x256xi32>
    %362 = arith.andi %357, %361 : vector<1x256xi1>
    %c0_115 = arith.constant 0 : index
    %c4 = arith.constant 4 : index
    %363 = memref.load %arg1[%c0_115, %c4] : memref<2x49xf32, #tpu.memory_space<smem>>
    %364 = vector.extract_strided_slice %9 {offsets = [0, 81], sizes = [1, 256], strides = [1, 1]} : vector<1x512xf32> to vector<1x256xf32>
    %365 = vector.broadcast %363 : f32 to vector<1x256xf32>
    %366 = arith.mulf %365, %364 : vector<1x256xf32>
    %c1_116 = arith.constant 1 : index
    %c4_117 = arith.constant 4 : index
    %367 = memref.load %arg1[%c1_116, %c4_117] : memref<2x49xf32, #tpu.memory_space<smem>>
    %368 = vector.extract_strided_slice %10 {offsets = [0, 81], sizes = [1, 256], strides = [1, 1]} : vector<1x512xf32> to vector<1x256xf32>
    %369 = vector.broadcast %367 : f32 to vector<1x256xf32>
    %370 = arith.mulf %369, %368 : vector<1x256xf32>
    %371 = arith.addf %366, %370 : vector<1x256xf32>
    %c0_118 = arith.constant 0 : index
    %c11 = arith.constant 11 : index
    %372 = memref.load %arg1[%c0_118, %c11] : memref<2x49xf32, #tpu.memory_space<smem>>
    %373 = vector.extract_strided_slice %9 {offsets = [0, 97], sizes = [1, 256], strides = [1, 1]} : vector<1x512xf32> to vector<1x256xf32>
    %374 = vector.broadcast %372 : f32 to vector<1x256xf32>
    %375 = arith.mulf %374, %373 : vector<1x256xf32>
    %c1_119 = arith.constant 1 : index
    %c11_120 = arith.constant 11 : index
    %376 = memref.load %arg1[%c1_119, %c11_120] : memref<2x49xf32, #tpu.memory_space<smem>>
    %377 = vector.extract_strided_slice %10 {offsets = [0, 97], sizes = [1, 256], strides = [1, 1]} : vector<1x512xf32> to vector<1x256xf32>
    %378 = vector.broadcast %376 : f32 to vector<1x256xf32>
    %379 = arith.mulf %378, %377 : vector<1x256xf32>
    %380 = arith.addf %375, %379 : vector<1x256xf32>
    %381 = arith.addf %371, %380 : vector<1x256xf32>
    %c0_121 = arith.constant 0 : index
    %c18 = arith.constant 18 : index
    %382 = memref.load %arg1[%c0_121, %c18] : memref<2x49xf32, #tpu.memory_space<smem>>
    %383 = vector.extract_strided_slice %9 {offsets = [0, 113], sizes = [1, 256], strides = [1, 1]} : vector<1x512xf32> to vector<1x256xf32>
    %384 = vector.broadcast %382 : f32 to vector<1x256xf32>
    %385 = arith.mulf %384, %383 : vector<1x256xf32>
    %c1_122 = arith.constant 1 : index
    %c18_123 = arith.constant 18 : index
    %386 = memref.load %arg1[%c1_122, %c18_123] : memref<2x49xf32, #tpu.memory_space<smem>>
    %387 = vector.extract_strided_slice %10 {offsets = [0, 113], sizes = [1, 256], strides = [1, 1]} : vector<1x512xf32> to vector<1x256xf32>
    %388 = vector.broadcast %386 : f32 to vector<1x256xf32>
    %389 = arith.mulf %388, %387 : vector<1x256xf32>
    %390 = arith.addf %385, %389 : vector<1x256xf32>
    %391 = arith.addf %381, %390 : vector<1x256xf32>
    %c0_124 = arith.constant 0 : index
    %c25 = arith.constant 25 : index
    %392 = memref.load %arg1[%c0_124, %c25] : memref<2x49xf32, #tpu.memory_space<smem>>
    %393 = vector.extract_strided_slice %9 {offsets = [0, 129], sizes = [1, 256], strides = [1, 1]} : vector<1x512xf32> to vector<1x256xf32>
    %394 = vector.broadcast %392 : f32 to vector<1x256xf32>
    %395 = arith.mulf %394, %393 : vector<1x256xf32>
    %c1_125 = arith.constant 1 : index
    %c25_126 = arith.constant 25 : index
    %396 = memref.load %arg1[%c1_125, %c25_126] : memref<2x49xf32, #tpu.memory_space<smem>>
    %397 = vector.extract_strided_slice %10 {offsets = [0, 129], sizes = [1, 256], strides = [1, 1]} : vector<1x512xf32> to vector<1x256xf32>
    %398 = vector.broadcast %396 : f32 to vector<1x256xf32>
    %399 = arith.mulf %398, %397 : vector<1x256xf32>
    %400 = arith.addf %395, %399 : vector<1x256xf32>
    %401 = arith.addf %391, %400 : vector<1x256xf32>
    %c0_127 = arith.constant 0 : index
    %c32 = arith.constant 32 : index
    %402 = memref.load %arg1[%c0_127, %c32] : memref<2x49xf32, #tpu.memory_space<smem>>
    %403 = vector.extract_strided_slice %9 {offsets = [0, 145], sizes = [1, 256], strides = [1, 1]} : vector<1x512xf32> to vector<1x256xf32>
    %404 = vector.broadcast %402 : f32 to vector<1x256xf32>
    %405 = arith.mulf %404, %403 : vector<1x256xf32>
    %c1_128 = arith.constant 1 : index
    %c32_129 = arith.constant 32 : index
    %406 = memref.load %arg1[%c1_128, %c32_129] : memref<2x49xf32, #tpu.memory_space<smem>>
    %407 = vector.extract_strided_slice %10 {offsets = [0, 145], sizes = [1, 256], strides = [1, 1]} : vector<1x512xf32> to vector<1x256xf32>
    %408 = vector.broadcast %406 : f32 to vector<1x256xf32>
    %409 = arith.mulf %408, %407 : vector<1x256xf32>
    %410 = arith.addf %405, %409 : vector<1x256xf32>
    %411 = arith.addf %401, %410 : vector<1x256xf32>
    %c0_130 = arith.constant 0 : index
    %c39 = arith.constant 39 : index
    %412 = memref.load %arg1[%c0_130, %c39] : memref<2x49xf32, #tpu.memory_space<smem>>
    %413 = vector.extract_strided_slice %9 {offsets = [0, 161], sizes = [1, 256], strides = [1, 1]} : vector<1x512xf32> to vector<1x256xf32>
    %414 = vector.broadcast %412 : f32 to vector<1x256xf32>
    %415 = arith.mulf %414, %413 : vector<1x256xf32>
    %c1_131 = arith.constant 1 : index
    %c39_132 = arith.constant 39 : index
    %416 = memref.load %arg1[%c1_131, %c39_132] : memref<2x49xf32, #tpu.memory_space<smem>>
    %417 = vector.extract_strided_slice %10 {offsets = [0, 161], sizes = [1, 256], strides = [1, 1]} : vector<1x512xf32> to vector<1x256xf32>
    %418 = vector.broadcast %416 : f32 to vector<1x256xf32>
    %419 = arith.mulf %418, %417 : vector<1x256xf32>
    %420 = arith.addf %415, %419 : vector<1x256xf32>
    %421 = arith.addf %411, %420 : vector<1x256xf32>
    %c0_133 = arith.constant 0 : index
    %c46 = arith.constant 46 : index
    %422 = memref.load %arg1[%c0_133, %c46] : memref<2x49xf32, #tpu.memory_space<smem>>
    %423 = vector.extract_strided_slice %9 {offsets = [0, 177], sizes = [1, 256], strides = [1, 1]} : vector<1x512xf32> to vector<1x256xf32>
    %424 = vector.broadcast %422 : f32 to vector<1x256xf32>
    %425 = arith.mulf %424, %423 : vector<1x256xf32>
    %c1_134 = arith.constant 1 : index
    %c46_135 = arith.constant 46 : index
    %426 = memref.load %arg1[%c1_134, %c46_135] : memref<2x49xf32, #tpu.memory_space<smem>>
    %427 = vector.extract_strided_slice %10 {offsets = [0, 177], sizes = [1, 256], strides = [1, 1]} : vector<1x512xf32> to vector<1x256xf32>
    %428 = vector.broadcast %426 : f32 to vector<1x256xf32>
    %429 = arith.mulf %428, %427 : vector<1x256xf32>
    %430 = arith.addf %425, %429 : vector<1x256xf32>
    %431 = arith.addf %421, %430 : vector<1x256xf32>
    %cst_136 = arith.constant 0.000000e+00 : f32
    %432 = vector.broadcast %cst_136 : f32 to vector<1x256xf32>
    %433 = arith.select %362, %431, %432 : vector<1x256xi1>, vector<1x256xf32>
    %434 = arith.addf %353, %433 : vector<1x256xf32>
    %c2_i32 = arith.constant 2 : i32
    %435 = vector.broadcast %c2_i32 : i32 to vector<1x256xi32>
    %436 = arith.addi %27, %435 : vector<1x256xi32>
    %c0_i32_137 = arith.constant 0 : i32
    %437 = vector.broadcast %c0_i32_137 : i32 to vector<1x256xi32>
    %438 = arith.cmpi sge, %436, %437 : vector<1x256xi32>
    %c2_i32_138 = arith.constant 2 : i32
    %439 = vector.broadcast %c2_i32_138 : i32 to vector<1x256xi32>
    %440 = arith.addi %27, %439 : vector<1x256xi32>
    %c16_i32_139 = arith.constant 16 : i32
    %441 = vector.broadcast %c16_i32_139 : i32 to vector<1x256xi32>
    %442 = arith.cmpi slt, %440, %441 : vector<1x256xi32>
    %443 = arith.andi %438, %442 : vector<1x256xi1>
    %c0_140 = arith.constant 0 : index
    %c5 = arith.constant 5 : index
    %444 = memref.load %arg1[%c0_140, %c5] : memref<2x49xf32, #tpu.memory_space<smem>>
    %445 = vector.extract_strided_slice %9 {offsets = [0, 82], sizes = [1, 256], strides = [1, 1]} : vector<1x512xf32> to vector<1x256xf32>
    %446 = vector.broadcast %444 : f32 to vector<1x256xf32>
    %447 = arith.mulf %446, %445 : vector<1x256xf32>
    %c1_141 = arith.constant 1 : index
    %c5_142 = arith.constant 5 : index
    %448 = memref.load %arg1[%c1_141, %c5_142] : memref<2x49xf32, #tpu.memory_space<smem>>
    %449 = vector.extract_strided_slice %10 {offsets = [0, 82], sizes = [1, 256], strides = [1, 1]} : vector<1x512xf32> to vector<1x256xf32>
    %450 = vector.broadcast %448 : f32 to vector<1x256xf32>
    %451 = arith.mulf %450, %449 : vector<1x256xf32>
    %452 = arith.addf %447, %451 : vector<1x256xf32>
    %c0_143 = arith.constant 0 : index
    %c12 = arith.constant 12 : index
    %453 = memref.load %arg1[%c0_143, %c12] : memref<2x49xf32, #tpu.memory_space<smem>>
    %454 = vector.extract_strided_slice %9 {offsets = [0, 98], sizes = [1, 256], strides = [1, 1]} : vector<1x512xf32> to vector<1x256xf32>
    %455 = vector.broadcast %453 : f32 to vector<1x256xf32>
    %456 = arith.mulf %455, %454 : vector<1x256xf32>
    %c1_144 = arith.constant 1 : index
    %c12_145 = arith.constant 12 : index
    %457 = memref.load %arg1[%c1_144, %c12_145] : memref<2x49xf32, #tpu.memory_space<smem>>
    %458 = vector.extract_strided_slice %10 {offsets = [0, 98], sizes = [1, 256], strides = [1, 1]} : vector<1x512xf32> to vector<1x256xf32>
    %459 = vector.broadcast %457 : f32 to vector<1x256xf32>
    %460 = arith.mulf %459, %458 : vector<1x256xf32>
    %461 = arith.addf %456, %460 : vector<1x256xf32>
    %462 = arith.addf %452, %461 : vector<1x256xf32>
    %c0_146 = arith.constant 0 : index
    %c19 = arith.constant 19 : index
    %463 = memref.load %arg1[%c0_146, %c19] : memref<2x49xf32, #tpu.memory_space<smem>>
    %464 = vector.extract_strided_slice %9 {offsets = [0, 114], sizes = [1, 256], strides = [1, 1]} : vector<1x512xf32> to vector<1x256xf32>
    %465 = vector.broadcast %463 : f32 to vector<1x256xf32>
    %466 = arith.mulf %465, %464 : vector<1x256xf32>
    %c1_147 = arith.constant 1 : index
    %c19_148 = arith.constant 19 : index
    %467 = memref.load %arg1[%c1_147, %c19_148] : memref<2x49xf32, #tpu.memory_space<smem>>
    %468 = vector.extract_strided_slice %10 {offsets = [0, 114], sizes = [1, 256], strides = [1, 1]} : vector<1x512xf32> to vector<1x256xf32>
    %469 = vector.broadcast %467 : f32 to vector<1x256xf32>
    %470 = arith.mulf %469, %468 : vector<1x256xf32>
    %471 = arith.addf %466, %470 : vector<1x256xf32>
    %472 = arith.addf %462, %471 : vector<1x256xf32>
    %c0_149 = arith.constant 0 : index
    %c26 = arith.constant 26 : index
    %473 = memref.load %arg1[%c0_149, %c26] : memref<2x49xf32, #tpu.memory_space<smem>>
    %474 = vector.extract_strided_slice %9 {offsets = [0, 130], sizes = [1, 256], strides = [1, 1]} : vector<1x512xf32> to vector<1x256xf32>
    %475 = vector.broadcast %473 : f32 to vector<1x256xf32>
    %476 = arith.mulf %475, %474 : vector<1x256xf32>
    %c1_150 = arith.constant 1 : index
    %c26_151 = arith.constant 26 : index
    %477 = memref.load %arg1[%c1_150, %c26_151] : memref<2x49xf32, #tpu.memory_space<smem>>
    %478 = vector.extract_strided_slice %10 {offsets = [0, 130], sizes = [1, 256], strides = [1, 1]} : vector<1x512xf32> to vector<1x256xf32>
    %479 = vector.broadcast %477 : f32 to vector<1x256xf32>
    %480 = arith.mulf %479, %478 : vector<1x256xf32>
    %481 = arith.addf %476, %480 : vector<1x256xf32>
    %482 = arith.addf %472, %481 : vector<1x256xf32>
    %c0_152 = arith.constant 0 : index
    %c33 = arith.constant 33 : index
    %483 = memref.load %arg1[%c0_152, %c33] : memref<2x49xf32, #tpu.memory_space<smem>>
    %484 = vector.extract_strided_slice %9 {offsets = [0, 146], sizes = [1, 256], strides = [1, 1]} : vector<1x512xf32> to vector<1x256xf32>
    %485 = vector.broadcast %483 : f32 to vector<1x256xf32>
    %486 = arith.mulf %485, %484 : vector<1x256xf32>
    %c1_153 = arith.constant 1 : index
    %c33_154 = arith.constant 33 : index
    %487 = memref.load %arg1[%c1_153, %c33_154] : memref<2x49xf32, #tpu.memory_space<smem>>
    %488 = vector.extract_strided_slice %10 {offsets = [0, 146], sizes = [1, 256], strides = [1, 1]} : vector<1x512xf32> to vector<1x256xf32>
    %489 = vector.broadcast %487 : f32 to vector<1x256xf32>
    %490 = arith.mulf %489, %488 : vector<1x256xf32>
    %491 = arith.addf %486, %490 : vector<1x256xf32>
    %492 = arith.addf %482, %491 : vector<1x256xf32>
    %c0_155 = arith.constant 0 : index
    %c40 = arith.constant 40 : index
    %493 = memref.load %arg1[%c0_155, %c40] : memref<2x49xf32, #tpu.memory_space<smem>>
    %494 = vector.extract_strided_slice %9 {offsets = [0, 162], sizes = [1, 256], strides = [1, 1]} : vector<1x512xf32> to vector<1x256xf32>
    %495 = vector.broadcast %493 : f32 to vector<1x256xf32>
    %496 = arith.mulf %495, %494 : vector<1x256xf32>
    %c1_156 = arith.constant 1 : index
    %c40_157 = arith.constant 40 : index
    %497 = memref.load %arg1[%c1_156, %c40_157] : memref<2x49xf32, #tpu.memory_space<smem>>
    %498 = vector.extract_strided_slice %10 {offsets = [0, 162], sizes = [1, 256], strides = [1, 1]} : vector<1x512xf32> to vector<1x256xf32>
    %499 = vector.broadcast %497 : f32 to vector<1x256xf32>
    %500 = arith.mulf %499, %498 : vector<1x256xf32>
    %501 = arith.addf %496, %500 : vector<1x256xf32>
    %502 = arith.addf %492, %501 : vector<1x256xf32>
    %c0_158 = arith.constant 0 : index
    %c47 = arith.constant 47 : index
    %503 = memref.load %arg1[%c0_158, %c47] : memref<2x49xf32, #tpu.memory_space<smem>>
    %504 = vector.extract_strided_slice %9 {offsets = [0, 178], sizes = [1, 256], strides = [1, 1]} : vector<1x512xf32> to vector<1x256xf32>
    %505 = vector.broadcast %503 : f32 to vector<1x256xf32>
    %506 = arith.mulf %505, %504 : vector<1x256xf32>
    %c1_159 = arith.constant 1 : index
    %c47_160 = arith.constant 47 : index
    %507 = memref.load %arg1[%c1_159, %c47_160] : memref<2x49xf32, #tpu.memory_space<smem>>
    %508 = vector.extract_strided_slice %10 {offsets = [0, 178], sizes = [1, 256], strides = [1, 1]} : vector<1x512xf32> to vector<1x256xf32>
    %509 = vector.broadcast %507 : f32 to vector<1x256xf32>
    %510 = arith.mulf %509, %508 : vector<1x256xf32>
    %511 = arith.addf %506, %510 : vector<1x256xf32>
    %512 = arith.addf %502, %511 : vector<1x256xf32>
    %cst_161 = arith.constant 0.000000e+00 : f32
    %513 = vector.broadcast %cst_161 : f32 to vector<1x256xf32>
    %514 = arith.select %443, %512, %513 : vector<1x256xi1>, vector<1x256xf32>
    %515 = arith.addf %434, %514 : vector<1x256xf32>
    %c3_i32 = arith.constant 3 : i32
    %516 = vector.broadcast %c3_i32 : i32 to vector<1x256xi32>
    %517 = arith.addi %27, %516 : vector<1x256xi32>
    %c0_i32_162 = arith.constant 0 : i32
    %518 = vector.broadcast %c0_i32_162 : i32 to vector<1x256xi32>
    %519 = arith.cmpi sge, %517, %518 : vector<1x256xi32>
    %c3_i32_163 = arith.constant 3 : i32
    %520 = vector.broadcast %c3_i32_163 : i32 to vector<1x256xi32>
    %521 = arith.addi %27, %520 : vector<1x256xi32>
    %c16_i32_164 = arith.constant 16 : i32
    %522 = vector.broadcast %c16_i32_164 : i32 to vector<1x256xi32>
    %523 = arith.cmpi slt, %521, %522 : vector<1x256xi32>
    %524 = arith.andi %519, %523 : vector<1x256xi1>
    %c0_165 = arith.constant 0 : index
    %c6 = arith.constant 6 : index
    %525 = memref.load %arg1[%c0_165, %c6] : memref<2x49xf32, #tpu.memory_space<smem>>
    %526 = vector.extract_strided_slice %9 {offsets = [0, 83], sizes = [1, 256], strides = [1, 1]} : vector<1x512xf32> to vector<1x256xf32>
    %527 = vector.broadcast %525 : f32 to vector<1x256xf32>
    %528 = arith.mulf %527, %526 : vector<1x256xf32>
    %c1_166 = arith.constant 1 : index
    %c6_167 = arith.constant 6 : index
    %529 = memref.load %arg1[%c1_166, %c6_167] : memref<2x49xf32, #tpu.memory_space<smem>>
    %530 = vector.extract_strided_slice %10 {offsets = [0, 83], sizes = [1, 256], strides = [1, 1]} : vector<1x512xf32> to vector<1x256xf32>
    %531 = vector.broadcast %529 : f32 to vector<1x256xf32>
    %532 = arith.mulf %531, %530 : vector<1x256xf32>
    %533 = arith.addf %528, %532 : vector<1x256xf32>
    %c0_168 = arith.constant 0 : index
    %c13 = arith.constant 13 : index
    %534 = memref.load %arg1[%c0_168, %c13] : memref<2x49xf32, #tpu.memory_space<smem>>
    %535 = vector.extract_strided_slice %9 {offsets = [0, 99], sizes = [1, 256], strides = [1, 1]} : vector<1x512xf32> to vector<1x256xf32>
    %536 = vector.broadcast %534 : f32 to vector<1x256xf32>
    %537 = arith.mulf %536, %535 : vector<1x256xf32>
    %c1_169 = arith.constant 1 : index
    %c13_170 = arith.constant 13 : index
    %538 = memref.load %arg1[%c1_169, %c13_170] : memref<2x49xf32, #tpu.memory_space<smem>>
    %539 = vector.extract_strided_slice %10 {offsets = [0, 99], sizes = [1, 256], strides = [1, 1]} : vector<1x512xf32> to vector<1x256xf32>
    %540 = vector.broadcast %538 : f32 to vector<1x256xf32>
    %541 = arith.mulf %540, %539 : vector<1x256xf32>
    %542 = arith.addf %537, %541 : vector<1x256xf32>
    %543 = arith.addf %533, %542 : vector<1x256xf32>
    %c0_171 = arith.constant 0 : index
    %c20 = arith.constant 20 : index
    %544 = memref.load %arg1[%c0_171, %c20] : memref<2x49xf32, #tpu.memory_space<smem>>
    %545 = vector.extract_strided_slice %9 {offsets = [0, 115], sizes = [1, 256], strides = [1, 1]} : vector<1x512xf32> to vector<1x256xf32>
    %546 = vector.broadcast %544 : f32 to vector<1x256xf32>
    %547 = arith.mulf %546, %545 : vector<1x256xf32>
    %c1_172 = arith.constant 1 : index
    %c20_173 = arith.constant 20 : index
    %548 = memref.load %arg1[%c1_172, %c20_173] : memref<2x49xf32, #tpu.memory_space<smem>>
    %549 = vector.extract_strided_slice %10 {offsets = [0, 115], sizes = [1, 256], strides = [1, 1]} : vector<1x512xf32> to vector<1x256xf32>
    %550 = vector.broadcast %548 : f32 to vector<1x256xf32>
    %551 = arith.mulf %550, %549 : vector<1x256xf32>
    %552 = arith.addf %547, %551 : vector<1x256xf32>
    %553 = arith.addf %543, %552 : vector<1x256xf32>
    %c0_174 = arith.constant 0 : index
    %c27 = arith.constant 27 : index
    %554 = memref.load %arg1[%c0_174, %c27] : memref<2x49xf32, #tpu.memory_space<smem>>
    %555 = vector.extract_strided_slice %9 {offsets = [0, 131], sizes = [1, 256], strides = [1, 1]} : vector<1x512xf32> to vector<1x256xf32>
    %556 = vector.broadcast %554 : f32 to vector<1x256xf32>
    %557 = arith.mulf %556, %555 : vector<1x256xf32>
    %c1_175 = arith.constant 1 : index
    %c27_176 = arith.constant 27 : index
    %558 = memref.load %arg1[%c1_175, %c27_176] : memref<2x49xf32, #tpu.memory_space<smem>>
    %559 = vector.extract_strided_slice %10 {offsets = [0, 131], sizes = [1, 256], strides = [1, 1]} : vector<1x512xf32> to vector<1x256xf32>
    %560 = vector.broadcast %558 : f32 to vector<1x256xf32>
    %561 = arith.mulf %560, %559 : vector<1x256xf32>
    %562 = arith.addf %557, %561 : vector<1x256xf32>
    %563 = arith.addf %553, %562 : vector<1x256xf32>
    %c0_177 = arith.constant 0 : index
    %c34 = arith.constant 34 : index
    %564 = memref.load %arg1[%c0_177, %c34] : memref<2x49xf32, #tpu.memory_space<smem>>
    %565 = vector.extract_strided_slice %9 {offsets = [0, 147], sizes = [1, 256], strides = [1, 1]} : vector<1x512xf32> to vector<1x256xf32>
    %566 = vector.broadcast %564 : f32 to vector<1x256xf32>
    %567 = arith.mulf %566, %565 : vector<1x256xf32>
    %c1_178 = arith.constant 1 : index
    %c34_179 = arith.constant 34 : index
    %568 = memref.load %arg1[%c1_178, %c34_179] : memref<2x49xf32, #tpu.memory_space<smem>>
    %569 = vector.extract_strided_slice %10 {offsets = [0, 147], sizes = [1, 256], strides = [1, 1]} : vector<1x512xf32> to vector<1x256xf32>
    %570 = vector.broadcast %568 : f32 to vector<1x256xf32>
    %571 = arith.mulf %570, %569 : vector<1x256xf32>
    %572 = arith.addf %567, %571 : vector<1x256xf32>
    %573 = arith.addf %563, %572 : vector<1x256xf32>
    %c0_180 = arith.constant 0 : index
    %c41 = arith.constant 41 : index
    %574 = memref.load %arg1[%c0_180, %c41] : memref<2x49xf32, #tpu.memory_space<smem>>
    %575 = vector.extract_strided_slice %9 {offsets = [0, 163], sizes = [1, 256], strides = [1, 1]} : vector<1x512xf32> to vector<1x256xf32>
    %576 = vector.broadcast %574 : f32 to vector<1x256xf32>
    %577 = arith.mulf %576, %575 : vector<1x256xf32>
    %c1_181 = arith.constant 1 : index
    %c41_182 = arith.constant 41 : index
    %578 = memref.load %arg1[%c1_181, %c41_182] : memref<2x49xf32, #tpu.memory_space<smem>>
    %579 = vector.extract_strided_slice %10 {offsets = [0, 163], sizes = [1, 256], strides = [1, 1]} : vector<1x512xf32> to vector<1x256xf32>
    %580 = vector.broadcast %578 : f32 to vector<1x256xf32>
    %581 = arith.mulf %580, %579 : vector<1x256xf32>
    %582 = arith.addf %577, %581 : vector<1x256xf32>
    %583 = arith.addf %573, %582 : vector<1x256xf32>
    %c0_183 = arith.constant 0 : index
    %c48 = arith.constant 48 : index
    %584 = memref.load %arg1[%c0_183, %c48] : memref<2x49xf32, #tpu.memory_space<smem>>
    %585 = vector.extract_strided_slice %9 {offsets = [0, 179], sizes = [1, 256], strides = [1, 1]} : vector<1x512xf32> to vector<1x256xf32>
    %586 = vector.broadcast %584 : f32 to vector<1x256xf32>
    %587 = arith.mulf %586, %585 : vector<1x256xf32>
    %c1_184 = arith.constant 1 : index
    %c48_185 = arith.constant 48 : index
    %588 = memref.load %arg1[%c1_184, %c48_185] : memref<2x49xf32, #tpu.memory_space<smem>>
    %589 = vector.extract_strided_slice %10 {offsets = [0, 179], sizes = [1, 256], strides = [1, 1]} : vector<1x512xf32> to vector<1x256xf32>
    %590 = vector.broadcast %588 : f32 to vector<1x256xf32>
    %591 = arith.mulf %590, %589 : vector<1x256xf32>
    %592 = arith.addf %587, %591 : vector<1x256xf32>
    %593 = arith.addf %583, %592 : vector<1x256xf32>
    %cst_186 = arith.constant 0.000000e+00 : f32
    %594 = vector.broadcast %cst_186 : f32 to vector<1x256xf32>
    %595 = arith.select %524, %593, %594 : vector<1x256xi1>, vector<1x256xf32>
    %596 = arith.addf %515, %595 : vector<1x256xf32>
    %597 = arith.negf %596 : vector<1x256xf32>
    %598 = math.exp %597 : vector<1x256xf32>
    %cst_187 = arith.constant 1.000000e+00 : f32
    %599 = vector.broadcast %cst_187 : f32 to vector<1x256xf32>
    %600 = arith.addf %599, %598 : vector<1x256xf32>
    %601 = arith.divf %599, %600 : vector<1x256xf32>
    %c0_188 = arith.constant 0 : index
    %c0_189 = arith.constant 0 : index
    %c0_190 = arith.constant 0 : index
    %602 = vector.load %arg4[%c0_188, %c0_189, %c0_190] : memref<1x1x256xf32, #tpu.memory_space<vmem>>, vector<1x1x256xf32>
    %603 = vector.shape_cast %602 : vector<1x1x256xf32> to vector<1x256xf32>
    %604 = vector.shape_cast %601 : vector<1x256xf32> to vector<1x1x256xf32>
    tpu.vector_store %arg4[%c0_188, %c0_189, %c0_190], %604 {strides = array<i32>} : memref<1x1x256xf32, #tpu.memory_space<vmem>>, vector<1x1x256xf32>,
    return
  }
  func.func @transform_0(%arg0: i32) -> (i32, i32) {
    %c0_i32 = arith.constant 0 : i32
    %c0_i32_0 = arith.constant 0 : i32
    %c0_i32_1 = arith.constant 0 : i32
    return %c0_i32, %c0_i32_0 : i32, i32
  }
  func.func @transform_1(%arg0: i32) -> i32 {
    %c0_i32 = arith.constant 0 : i32
    %c0_i32_0 = arith.constant 0 : i32
    return %c0_i32 : i32
  }
  func.func @transform_2(%arg0: i32) -> (i32, i32, i32) {
    %c0_i32 = arith.constant 0 : i32
    %c0_i32_0 = arith.constant 0 : i32
    %c0_i32_1 = arith.constant 0 : i32
    return %arg0, %c0_i32, %c0_i32_0 : i32, i32, i32
  }
  func.func @transform_3(%arg0: i32) -> (i32, i32, i32) {
    %c0_i32 = arith.constant 0 : i32
    %c0_i32_0 = arith.constant 0 : i32
    %c0_i32_1 = arith.constant 0 : i32
    return %arg0, %c0_i32, %c0_i32_0 : i32, i32, i32
  }
}

</mosaic_0001>

<llo_original>
// kernel: spatial_gate_forward.1
$region0: #{spatial_gate_forward.1}
  #allocation0 [shape = 'u32[]', space=smem, size = 0x4, offset = 0x4, fixed_abs, tag = 'smem constant byte address 0x4 - core index']
  #allocation1 [shape = 'u32[144,128]{1,0:T(1,128)}', space=vmem, size = 0x12000, scoped, tag = 'internal scratch']
  #allocation2 [shape = 'f32[1]{0:T(128)S(6)}', space=smem, size = 0x200, scoped, tag = 'scoped memory for spatial_gate_forward.1']
  %s0 = inlined_call_operand.vmem [shape: f32[2,49], index: 0, kind: input, shape index: {}]
  %s1 = inlined_call_operand.<no memory space> [shape: f32[1], index: 1, kind: input, shape index: {}]
  %s2 = inlined_call_operand.vmem [shape: f32[2,4,256], index: 2, kind: input, shape index: {}]
  %s3 = inlined_call_operand.vmem [shape: f32[2,1,256], index: 3, kind: output, shape index: {}]
  %s4 = sld [smem:[#allocation0]]
  $region49: #{spatial_gate_forward.1} parent=0
    _
  %s6 = ssub.s32 1, %s4
  %s7 = scalar_select 0, %s6, %s4
  %8 = sst [smem:[#allocation2]] %s1
  $region1: #{spatial_gate_forward.1} parent=0
    #allocation3 [shape = 'u8[1024]{0}', space=smem, size = 0x400, scoped, tag = 'input window, operand 0, single buffered']
    #allocation4 [shape = 's32[2]{0}', space=sflag, size = 0x8, scoped, tag = 'scoped memory for spatial_gate_forward.1']
    %9 = vsyncpa [#allocation4], 0
    loop: start=0, step=1, limit=4
    $region2: #{spatial_gate_forward.1} parent=1 // loop_pre_header
      _
    $region3: #{spatial_gate_forward.1} parent=1 // loop_header
      %s11 = sphi 0, %s15
      %p12 = scmp.ge.s32.totalorder %s11, 4
      %s19 = sphi 0, %s19
      %s21 = sphi 0, %s19
      %s22 = sphi 0, %s21
      %s36 = sphi 0, %s22
      %s40 = sphi 0, %s40
      %s42 = sphi 0, %s40
      %s43 = sphi 0, %s42
      %s57 = sphi 0, %s43
      %s63 = sphi 0, %s65
      %s66 = sphi 0, %s63
      %s67 = sphi 0, %s66
      %s83 = sphi 0, %s67
      %s89 = sphi 0, %s91
      %s92 = sphi 0, %s89
      %s93 = sphi 0, %s92
      %s109 = sphi 0, %s93
    $region4: #{spatial_gate_forward.1} parent=1 // loop_header_branch
      %14 = sbr.rel (%p12) target = $region8
    $region5: #{spatial_gate_forward.1} parent=1 // loop_body
      %s16 = ssub.s32 %s11, 1
      %s17 = ssub.s32 %s11, 2
      %s18 = sadd.s32 %s11, 1
      %s20 = sadd.s32 %s19, 1
      %p23 = scmp.eq.s32.totalorder %s11, 1
      %p24 = scmp.ne.s32.totalorder %s19, %s21
      %p25 = scmp.eq.s32.totalorder %s11, 0
      %p26 = por %p24, %p25
      %p27 = scmp.ne.s32.totalorder %s19, %s21
      %p28 = scmp.eq.s32.totalorder %s16, 1
      %p29 = por %p27, %p28
      %p30 = scmp.ne.s32.totalorder %s21, %s22
      %p31 = scmp.eq.s32.totalorder %s16, 0
      %p32 = por %p30, %p31
      %p33 = scmp.ne.s32.totalorder %s21, %s22
      %p34 = scmp.eq.s32.totalorder %s17, 1
      %p35 = por %p33, %p34
      %p37 = scmp.ne.s32.totalorder %s22, %s36
      %p38 = scmp.eq.s32.totalorder %s17, 0
      %p39 = por %p37, %p38
      %s41 = sadd.s32 %s40, 1
      %p44 = scmp.eq.s32.totalorder %s11, 1
      %p45 = scmp.ne.s32.totalorder %s40, %s42
      %p46 = scmp.eq.s32.totalorder %s11, 0
      %p47 = por %p45, %p46
      %p48 = scmp.ne.s32.totalorder %s40, %s42
      %p49 = scmp.eq.s32.totalorder %s16, 1
      %p50 = por %p48, %p49
      %p51 = scmp.ne.s32.totalorder %s42, %s43
      %p52 = scmp.eq.s32.totalorder %s16, 0
      %p53 = por %p51, %p52
      %p54 = scmp.ne.s32.totalorder %s42, %s43
      %p55 = scmp.eq.s32.totalorder %s17, 1
      %p56 = por %p54, %p55
      %p58 = scmp.ne.s32.totalorder %s43, %s57
      %p59 = scmp.eq.s32.totalorder %s17, 0
      %p60 = por %p58, %p59
      %s61 = ssub.s32 %s11, %s18
      %p62 = scmp.eq.s32.totalorder %s61, 0
      %s64 = sadd.s32 %s63, 1
      %s65 = scalar_select %p62, %s63, %s64
      %p68 = pneg %p62
      %p69 = scmp.eq.s32.totalorder %s11, 1
      %p70 = por %p68, %p69
      %p71 = scmp.ne.s32.totalorder %s63, %s66
      %p72 = scmp.eq.s32.totalorder %s11, 0
      %p73 = por %p71, %p72
      %p74 = scmp.ne.s32.totalorder %s63, %s66
      %p75 = scmp.eq.s32.totalorder %s16, 1
      %p76 = por %p74, %p75
      %p77 = scmp.ne.s32.totalorder %s66, %s67
      %p78 = scmp.eq.s32.totalorder %s16, 0
      %p79 = por %p77, %p78
      %p80 = scmp.ne.s32.totalorder %s66, %s67
      %p81 = scmp.eq.s32.totalorder %s17, 1
      %p82 = por %p80, %p81
      %p84 = scmp.ne.s32.totalorder %s67, %s83
      %p85 = scmp.eq.s32.totalorder %s17, 0
      %p86 = por %p84, %p85
      %s87 = ssub.s32 %s11, %s18
      %p88 = scmp.eq.s32.totalorder %s87, 0
      %s90 = sadd.s32 %s89, 1
      %s91 = scalar_select %p88, %s89, %s90
      %p94 = pneg %p88
      %p95 = scmp.eq.s32.totalorder %s11, 1
      %p96 = por %p94, %p95
      %p97 = scmp.ne.s32.totalorder %s89, %s92
      %p98 = scmp.eq.s32.totalorder %s11, 0
      %p99 = por %p97, %p98
      %p100 = scmp.ne.s32.totalorder %s89, %s92
      %p101 = scmp.eq.s32.totalorder %s16, 1
      %p102 = por %p100, %p101
      %p103 = scmp.ne.s32.totalorder %s92, %s93
      %p104 = scmp.eq.s32.totalorder %s16, 0
      %p105 = por %p103, %p104
      %p106 = scmp.ne.s32.totalorder %s92, %s93
      %p107 = scmp.eq.s32.totalorder %s17, 1
      %p108 = por %p106, %p107
      %p110 = scmp.ne.s32.totalorder %s93, %s109
      %p111 = scmp.eq.s32.totalorder %s17, 0
      %p112 = por %p110, %p111
      %p113 = scmp.le.s32.totalorder 1, %s11
      %p114 = scmp.lt.s32.totalorder %s11, 3
      %p115 = pnand %p113, %p114
      %p116 = pneg %p115
      // Predicated region
      $region9: #{spatial_gate_forward.1} parent=5 // pred_check
        _
      $region10: #{spatial_gate_forward.1} parent=5 // pred_check_branch
        %118 = sbr.rel (%p115) target = $region12
      $region11: #{spatial_gate_forward.1} parent=5 // pred_region
        %s119 = ssub.s32 %s11, 1
        // Predicated region
        $region13: #{spatial_gate_forward.1} parent=11 // pred_check
          %p120 = pneg %p32
        $region14: #{spatial_gate_forward.1} parent=11 // pred_check_branch
          %122 = sbr.rel (%p120) target = $region16
        $region15: #{spatial_gate_forward.1} parent=11 // pred_region
          %s124 = ssub.s32 32, 32
          %125 = vsyncadd [#allocation4], %s124
          %s127 = sshll.u32 %s0, 4
          %s128 = int_to_ptr.vmem [resolvable:$true] %s127
          %130 = dma.vmem_to_smem %s128, 32, [#allocation3], [#allocation4]
        $region16: #{spatial_gate_forward.1} parent=11 // pred_fallthru
          _
        // Predicated region
        $region17: #{spatial_gate_forward.1} parent=11 // pred_check
          %p131 = pneg %p53
        $region18: #{spatial_gate_forward.1} parent=11 // pred_check_branch
          %133 = sbr.rel (%p131) target = $region20
        $region19: #{spatial_gate_forward.1} parent=11 // pred_region
          _
        $region20: #{spatial_gate_forward.1} parent=11 // pred_fallthru
          _
      $region12: #{spatial_gate_forward.1} parent=5 // pred_fallthru
        _
      %p134 = scmp.lt.s32.totalorder %s11, 2
      // Predicated region
      $region21: #{spatial_gate_forward.1} parent=5 // pred_check
        %p135 = pneg %p134
      $region22: #{spatial_gate_forward.1} parent=5 // pred_check_branch
        %137 = sbr.rel (%p135) target = $region24
      $region23: #{spatial_gate_forward.1} parent=5 // pred_region
        // Predicated region
        $region25: #{spatial_gate_forward.1} parent=23 // pred_check
          %p138 = pneg %p73
        $region26: #{spatial_gate_forward.1} parent=23 // pred_check_branch
          %140 = sbr.rel (%p138) target = $region28
        $region27: #{spatial_gate_forward.1} parent=23 // pred_region
          %p141 = scmp.lt.s32.totalorder %s11, 1
          %s142 = scalar_select %p141, %s11, 1
          %s143 = smul.addr %s142, 2
          %s144 = smul.addr %s143, 4
          %s145 = scalar_lea.vmem %s2, %s144
        $region28: #{spatial_gate_forward.1} parent=23 // pred_fallthru
          _
      $region24: #{spatial_gate_forward.1} parent=5 // pred_fallthru
        _
      %p146 = scmp.le.s32.totalorder 1, %s11
      %p147 = scmp.lt.s32.totalorder %s11, 3
      %p148 = pnand %p146, %p147
      %p149 = pneg %p148
      // Predicated region
      $region29: #{spatial_gate_forward.1} parent=5 // pred_check
        _
      $region30: #{spatial_gate_forward.1} parent=5 // pred_check_branch
        %151 = sbr.rel (%p148) target = $region32
      $region31: #{spatial_gate_forward.1} parent=5 // pred_region
        %s152 = ssub.s32 %s11, 1
        // Predicated region
        $region33: #{spatial_gate_forward.1} parent=31 // pred_check
          %p153 = pneg %p32
        $region34: #{spatial_gate_forward.1} parent=31 // pred_check_branch
          %155 = sbr.rel (%p153) target = $region36
        $region35: #{spatial_gate_forward.1} parent=31 // pred_region
          %156 = dma.done [#allocation4], 32
        $region36: #{spatial_gate_forward.1} parent=31 // pred_fallthru
          _
        %157 = sfence
        %p158 = pneg %p32
        %p159 = pneg %p29
        %p160 = pneg %p53
        %p161 = pneg %p50
        %p162 = scmp.lt.s32.totalorder %s16, 1
        %s163 = scalar_select %p162, %s16, 1
        %s164 = smul.addr %s163, 2
        %s165 = smul.addr %s164, 4
        %s166 = scalar_lea.vmem %s2, %s165
        %p167 = pneg %p79
        %p168 = pneg %p76
        %p169 = pneg %p105
        %p170 = pneg %p102
        %p171 = scmp.lt.s32.totalorder %s16, 1
        %s172 = scalar_select %p171, %s16, 1
        %s173 = smul.addr %s172, 2
        %s174 = scalar_lea.vmem %s3, %s173
        %p175 = scmp.lt.s32.totalorder %s16, 1
        %s176 = scalar_select %p175, %s16, 1
        %s177 = smul.addr %s176, 2
        %s178 = smul.addr %s177, 4
        %s179 = scalar_lea.vmem %s2, %s178
        %p180 = scmp.lt.s32.totalorder %s16, 1
        %s181 = scalar_select %p180, %s16, 1
        %s182 = smul.addr %s181, 2
        %s183 = scalar_lea.vmem %s3, %s182
        %v184 = vld [vmem:[%s179] sm:$0xff]
        %v186 = vcombine.high %v184, %v184
        %vm188 = vcmask 1043456
        %v189 = vsel %vm188, %v184, -inf
        %v190 = vrot.slane %v189, 4
        %v191 = vmax.f32 %v189, %v190
        %v192 = vrot.slane %v191, 2
        %v193 = vmax.f32 %v191, %v192
        %v194 = vrot.slane %v193, 1
        %v195 = vmax.f32 %v193, %v194
        %v196 = vsel %vm188, %v186, -inf
        %v197 = vrot.slane %v196, 4
        %v198 = vmax.f32 %v196, %v197
        %v199 = vrot.slane %v198, 2
        %v200 = vmax.f32 %v198, %v199
        %v201 = vrot.slane %v200, 1
        %v202 = vmax.f32 %v200, %v201
        %v203 = vsel %vm188, %v184, 0.0
        %v204 = vrot.slane %v203, 4
        %v205 = vadd.f32 %v203, %v204
        %v206 = vrot.slane %v205, 2
        %v207 = vadd.f32 %v205, %v206
        %v208 = vrot.slane %v207, 1
        %v209 = vadd.f32 %v207, %v208
        %v210 = vsel %vm188, %v186, 0.0
        %v211 = vrot.slane %v210, 4
        %v212 = vadd.f32 %v210, %v211
        %v213 = vrot.slane %v212, 2
        %v214 = vadd.f32 %v212, %v213
        %v215 = vrot.slane %v214, 1
        %v216 = vadd.f32 %v214, %v215
        %v217 = vmul.f32 %v209, 0.25
        %v218 = vmul.f32 %v216, 0.25
        %v219 = vlaneseq
        %v220 = vand.u32 %v219, 127
        %v221 = vadd.s32 %v220, 128
        %vm222 = vcmp.lt.s32.totalorder %v220, 0
        %v223 = vsub.s32 0, %v220
        %v224 = vsel %vm222, %v223, %v220
        %v225 = vshrl.u32 %v224, 4
        %v226 = vand.u32 %v224, 15
        %v227 = vsub.s32 0, %v226
        %v228 = vsel %vm222, %v227, %v226
        %vm229 = vcmp.lt.s32.totalorder %v221, 0
        %v230 = vsub.s32 0, %v221
        %v231 = vsel %vm229, %v230, %v221
        %v232 = vshrl.u32 %v231, 4
        %v233 = vand.u32 %v231, 15
        %v234 = vsub.s32 0, %v233
        %v235 = vsel %vm229, %v234, %v233
        %vm236 = vcmp.ne.s32.totalorder %v228, 0
        %vm237 = vcmp.ne.s32.totalorder %v235, 0
        %vm238 = vcmp.lt.s32.totalorder %v228, 0
        %vm239 = vcmp.lt.s32.totalorder %v235, 0
        %vm240 = vmand %vm238, %vm236
        %vm241 = vmand %vm239, %vm237
        %v242 = vadd.s32 %v228, 16
        %v243 = vadd.s32 %v235, 16
        %v244 = vsel %vm240, %v242, %v228
        %v245 = vsel %vm241, %v243, %v235
        %s246 = sld [smem:[#allocation2]]
        %v247 = vstv %s246
        %v248 = vadd.s32 %v244, 4294967293
        %v249 = vadd.s32 %v245, 4294967293
        %vm250 = vcmp.ge.s32.totalorder %v248, 0
        %vm251 = vcmp.ge.s32.totalorder %v249, 0
        %vm252 = vcmp.lt.s32.totalorder %v248, 16
        %vm253 = vcmp.lt.s32.totalorder %v249, 16
        %vm254 = vmand %vm250, %vm252
        %vm255 = vmand %vm251, %vm253
        %s256 = sld [smem:[#allocation3]]
        %v257 = vstv %s256
        %v258 = vmul.f32 %v257, 0.0
        %v259 = vmul.f32 %v257, %v195
        %v260 = vmul.f32 %v257, %v202
        %s261 = sld [smem:[#allocation3 + $0x80]]
        %v262 = vstv %s261
        %v263 = vmul.f32 %v262, 0.0
        %v264 = vmul.f32 %v262, %v217
        %v265 = vmul.f32 %v262, %v218
        %v266 = vadd.f32 %v258, %v263
        %v267 = vadd.f32 %v259, %v264
        %v268 = vadd.f32 %v260, %v265
        %s269 = sld [smem:[#allocation3 + $0x7]]
        %v270 = vstv %s269
        %v271 = vmul.f32 %v270, 0.0
        %v272 = vmul.f32 %v270, %v195
        %v273 = vmul.f32 %v270, %v202
        %s274 = sld [smem:[#allocation3 + $0x87]]
        %v275 = vstv %s274
        %v276 = vmul.f32 %v275, 0.0
        %v277 = vmul.f32 %v275, %v217
        %v278 = vmul.f32 %v275, %v218
        %v279 = vadd.f32 %v271, %v276
        %v280 = vadd.f32 %v272, %v277
        %v281 = vadd.f32 %v273, %v278
        %285 = vrot.lane.b32.xlu0 %v279, 112
        %v286 = vpop.permute.xlu0 %285
        %287 = vrot.lane.b32.xlu0 %v280, 112
        %v288 = vpop.permute.xlu0 %287
        %289 = vrot.lane.b32.xlu0 %v281, 112
        %v290 = vpop.permute.xlu0 %289
        %vm291 = vcmask 916480
        %v292 = vsel %vm291, %v286, %v288
        %v293 = vsel %vm291, %v288, %v290
        %v297 = vadd.f32 %v266, %v292
        %v298 = vadd.f32 %v267, %v293
        %v299 = vadd.f32 %v268, %v290
        %s300 = sld [smem:[#allocation3 + $0xe]]
        %v301 = vstv %s300
        %v302 = vmul.f32 %v301, 0.0
        %v303 = vmul.f32 %v301, %v195
        %v304 = vmul.f32 %v301, %v202
        %s305 = sld [smem:[#allocation3 + $0x8e]]
        %v306 = vstv %s305
        %v307 = vmul.f32 %v306, 0.0
        %v308 = vmul.f32 %v306, %v217
        %v309 = vmul.f32 %v306, %v218
        %v310 = vadd.f32 %v302, %v307
        %v311 = vadd.f32 %v303, %v308
        %v312 = vadd.f32 %v304, %v309
        %316 = vrot.lane.b32.xlu0 %v310, 96
        %v317 = vpop.permute.xlu0 %316
        %318 = vrot.lane.b32.xlu0 %v311, 96
        %v319 = vpop.permute.xlu0 %318
        %320 = vrot.lane.b32.xlu0 %v312, 96
        %v321 = vpop.permute.xlu0 %320
        %vm322 = vcmask 785408
        %v323 = vsel %vm322, %v317, %v319
        %v324 = vsel %vm322, %v319, %v321
        %v328 = vadd.f32 %v297, %v323
        %v329 = vadd.f32 %v298, %v324
        %v330 = vadd.f32 %v299, %v321
        %s331 = sld [smem:[#allocation3 + $0x15]]
        %v332 = vstv %s331
        %v333 = vmul.f32 %v332, 0.0
        %v334 = vmul.f32 %v332, %v195
        %v335 = vmul.f32 %v332, %v202
        %s336 = sld [smem:[#allocation3 + $0x95]]
        %v337 = vstv %s336
        %v338 = vmul.f32 %v337, 0.0
        %v339 = vmul.f32 %v337, %v217
        %v340 = vmul.f32 %v337, %v218
        %v341 = vadd.f32 %v333, %v338
        %v342 = vadd.f32 %v334, %v339
        %v343 = vadd.f32 %v335, %v340
        %347 = vrot.lane.b32.xlu0 %v341, 80
        %v348 = vpop.permute.xlu0 %347
        %349 = vrot.lane.b32.xlu0 %v342, 80
        %v350 = vpop.permute.xlu0 %349
        %351 = vrot.lane.b32.xlu0 %v343, 80
        %v352 = vpop.permute.xlu0 %351
        %vm353 = vcmask 654336
        %v354 = vsel %vm353, %v348, %v350
        %v355 = vsel %vm353, %v350, %v352
        %v359 = vadd.f32 %v328, %v354
        %v360 = vadd.f32 %v329, %v355
        %v361 = vadd.f32 %v330, %v352
        %s362 = sld [smem:[#allocation3 + $0x1c]]
        %v363 = vstv %s362
        %v364 = vmul.f32 %v363, %v195
        %v365 = vmul.f32 %v363, %v202
        %v366 = vmul.f32 %v363, 0.0
        %s367 = sld [smem:[#allocation3 + $0x9c]]
        %v368 = vstv %s367
        %v369 = vmul.f32 %v368, %v217
        %v370 = vmul.f32 %v368, %v218
        %v371 = vmul.f32 %v368, 0.0
        %v372 = vadd.f32 %v364, %v369
        %v373 = vadd.f32 %v365, %v370
        %v374 = vadd.f32 %v366, %v371
        %378 = vrot.lane.b32.xlu0 %v372, 64
        %v379 = vpop.permute.xlu0 %378
        %380 = vrot.lane.b32.xlu0 %v373, 64
        %v381 = vpop.permute.xlu0 %380
        %382 = vrot.lane.b32.xlu0 %v374, 64
        %v383 = vpop.permute.xlu0 %382
        %vm384 = vcmask 523264
        %v385 = vsel %vm384, %v379, %v381
        %v386 = vsel %vm384, %v381, %v383
        %v390 = vadd.f32 %v359, %v379
        %v391 = vadd.f32 %v360, %v385
        %v392 = vadd.f32 %v361, %v386
        %s393 = sld [smem:[#allocation3 + $0x23]]
        %v394 = vstv %s393
        %v395 = vmul.f32 %v394, %v195
        %v396 = vmul.f32 %v394, %v202
        %v397 = vmul.f32 %v394, 0.0
        %s398 = sld [smem:[#allocation3 + $0xa3]]
        %v399 = vstv %s398
        %v400 = vmul.f32 %v399, %v217
        %v401 = vmul.f32 %v399, %v218
        %v402 = vmul.f32 %v399, 0.0
        %v403 = vadd.f32 %v395, %v400
        %v404 = vadd.f32 %v396, %v401
        %v405 = vadd.f32 %v397, %v402
        %409 = vrot.lane.b32.xlu0 %v403, 48
        %v410 = vpop.permute.xlu0 %409
        %411 = vrot.lane.b32.xlu0 %v404, 48
        %v412 = vpop.permute.xlu0 %411
        %413 = vrot.lane.b32.xlu0 %v405, 48
        %v414 = vpop.permute.xlu0 %413
        %vm415 = vcmask 392192
        %v416 = vsel %vm415, %v410, %v412
        %v417 = vsel %vm415, %v412, %v414
        %v421 = vadd.f32 %v390, %v410
        %v422 = vadd.f32 %v391, %v416
        %v423 = vadd.f32 %v392, %v417
        %s424 = sld [smem:[#allocation3 + $0x2a]]
        %v425 = vstv %s424
        %v426 = vmul.f32 %v425, %v195
        %v427 = vmul.f32 %v425, %v202
        %v428 = vmul.f32 %v425, 0.0
        %s429 = sld [smem:[#allocation3 + $0xaa]]
        %v430 = vstv %s429
        %v431 = vmul.f32 %v430, %v217
        %v432 = vmul.f32 %v430, %v218
        %v433 = vmul.f32 %v430, 0.0
        %v434 = vadd.f32 %v426, %v431
        %v435 = vadd.f32 %v427, %v432
        %v436 = vadd.f32 %v428, %v433
        %440 = vrot.lane.b32.xlu0 %v434, 32
        %v441 = vpop.permute.xlu0 %440
        %442 = vrot.lane.b32.xlu0 %v435, 32
        %v443 = vpop.permute.xlu0 %442
        %444 = vrot.lane.b32.xlu0 %v436, 32
        %v445 = vpop.permute.xlu0 %444
        %vm446 = vcmask 261120
        %v447 = vsel %vm446, %v441, %v443
        %v448 = vsel %vm446, %v443, %v445
        %v452 = vadd.f32 %v421, %v441
        %v453 = vadd.f32 %v422, %v447
        %v454 = vadd.f32 %v423, %v448
        %458 = vrot.lane.b32.xlu0 %v452, 51
        %v459 = vpop.permute.xlu0 %458
        %460 = vrot.lane.b32.xlu0 %v453, 51
        %v461 = vpop.permute.xlu0 %460
        %462 = vrot.lane.b32.xlu0 %v454, 51
        %v463 = vpop.permute.xlu0 %462
        %vm464 = vcmask 416768
        %v465 = vsel %vm464, %v459, %v461
        %v466 = vsel %vm464, %v461, %v463
        %v469 = vsel %vm254, %v465, 0.0
        %v470 = vsel %vm255, %v466, 0.0
        %v471 = vadd.f32 %v247, %v469
        %v472 = vadd.f32 %v247, %v470
        %v473 = vadd.s32 %v244, 4294967294
        %v474 = vadd.s32 %v245, 4294967294
        %vm475 = vcmp.ge.s32.totalorder %v473, 0
        %vm476 = vcmp.ge.s32.totalorder %v474, 0
        %vm477 = vcmp.lt.s32.totalorder %v473, 16
        %vm478 = vcmp.lt.s32.totalorder %v474, 16
        %vm479 = vmand %vm475, %vm477
        %vm480 = vmand %vm476, %vm478
        %s481 = sld [smem:[#allocation3 + $0x1]]
        %v482 = vstv %s481
        %v483 = vmul.f32 %v482, 0.0
        %v484 = vmul.f32 %v482, %v195
        %v485 = vmul.f32 %v482, %v202
        %s486 = sld [smem:[#allocation3 + $0x81]]
        %v487 = vstv %s486
        %v488 = vmul.f32 %v487, 0.0
        %v489 = vmul.f32 %v487, %v217
        %v490 = vmul.f32 %v487, %v218
        %v491 = vadd.f32 %v483, %v488
        %v492 = vadd.f32 %v484, %v489
        %v493 = vadd.f32 %v485, %v490
        %s494 = sld [smem:[#allocation3 + $0x8]]
        %v495 = vstv %s494
        %v496 = vmul.f32 %v495, 0.0
        %v497 = vmul.f32 %v495, %v195
        %v498 = vmul.f32 %v495, %v202
        %s499 = sld [smem:[#allocation3 + $0x88]]
        %v500 = vstv %s499
        %v501 = vmul.f32 %v500, 0.0
        %v502 = vmul.f32 %v500, %v217
        %v503 = vmul.f32 %v500, %v218
        %v504 = vadd.f32 %v496, %v501
        %v505 = vadd.f32 %v497, %v502
        %v506 = vadd.f32 %v498, %v503
        %510 = vrot.lane.b32.xlu0 %v504, 112
        %v511 = vpop.permute.xlu0 %510
        %512 = vrot.lane.b32.xlu0 %v505, 112
        %v513 = vpop.permute.xlu0 %512
        %514 = vrot.lane.b32.xlu0 %v506, 112
        %v515 = vpop.permute.xlu0 %514
        %v516 = vsel %vm291, %v511, %v513
        %v517 = vsel %vm291, %v513, %v515
        %v521 = vadd.f32 %v491, %v516
        %v522 = vadd.f32 %v492, %v517
        %v523 = vadd.f32 %v493, %v515
        %s524 = sld [smem:[#allocation3 + $0xf]]
        %v525 = vstv %s524
        %v526 = vmul.f32 %v525, 0.0
        %v527 = vmul.f32 %v525, %v195
        %v528 = vmul.f32 %v525, %v202
        %s529 = sld [smem:[#allocation3 + $0x8f]]
        %v530 = vstv %s529
        %v531 = vmul.f32 %v530, 0.0
        %v532 = vmul.f32 %v530, %v217
        %v533 = vmul.f32 %v530, %v218
        %v534 = vadd.f32 %v526, %v531
        %v535 = vadd.f32 %v527, %v532
        %v536 = vadd.f32 %v528, %v533
        %540 = vrot.lane.b32.xlu0 %v534, 96
        %v541 = vpop.permute.xlu0 %540
        %542 = vrot.lane.b32.xlu0 %v535, 96
        %v543 = vpop.permute.xlu0 %542
        %544 = vrot.lane.b32.xlu0 %v536, 96
        %v545 = vpop.permute.xlu0 %544
        %v546 = vsel %vm322, %v541, %v543
        %v547 = vsel %vm322, %v543, %v545
        %v551 = vadd.f32 %v521, %v546
        %v552 = vadd.f32 %v522, %v547
        %v553 = vadd.f32 %v523, %v545
        %s554 = sld [smem:[#allocation3 + $0x16]]
        %v555 = vstv %s554
        %v556 = vmul.f32 %v555, 0.0
        %v557 = vmul.f32 %v555, %v195
        %v558 = vmul.f32 %v555, %v202
        %s559 = sld [smem:[#allocation3 + $0x96]]
        %v560 = vstv %s559
        %v561 = vmul.f32 %v560, 0.0
        %v562 = vmul.f32 %v560, %v217
        %v563 = vmul.f32 %v560, %v218
        %v564 = vadd.f32 %v556, %v561
        %v565 = vadd.f32 %v557, %v562
        %v566 = vadd.f32 %v558, %v563
        %570 = vrot.lane.b32.xlu0 %v564, 80
        %v571 = vpop.permute.xlu0 %570
        %572 = vrot.lane.b32.xlu0 %v565, 80
        %v573 = vpop.permute.xlu0 %572
        %574 = vrot.lane.b32.xlu0 %v566, 80
        %v575 = vpop.permute.xlu0 %574
        %v576 = vsel %vm353, %v571, %v573
        %v577 = vsel %vm353, %v573, %v575
        %v581 = vadd.f32 %v551, %v576
        %v582 = vadd.f32 %v552, %v577
        %v583 = vadd.f32 %v553, %v575
        %s584 = sld [smem:[#allocation3 + $0x1d]]
        %v585 = vstv %s584
        %v586 = vmul.f32 %v585, %v195
        %v587 = vmul.f32 %v585, %v202
        %v588 = vmul.f32 %v585, 0.0
        %s589 = sld [smem:[#allocation3 + $0x9d]]
        %v590 = vstv %s589
        %v591 = vmul.f32 %v590, %v217
        %v592 = vmul.f32 %v590, %v218
        %v593 = vmul.f32 %v590, 0.0
        %v594 = vadd.f32 %v586, %v591
        %v595 = vadd.f32 %v587, %v592
        %v596 = vadd.f32 %v588, %v593
        %600 = vrot.lane.b32.xlu0 %v594, 64
        %v601 = vpop.permute.xlu0 %600
        %602 = vrot.lane.b32.xlu0 %v595, 64
        %v603 = vpop.permute.xlu0 %602
        %604 = vrot.lane.b32.xlu0 %v596, 64
        %v605 = vpop.permute.xlu0 %604
        %v606 = vsel %vm384, %v601, %v603
        %v607 = vsel %vm384, %v603, %v605
        %v611 = vadd.f32 %v581, %v601
        %v612 = vadd.f32 %v582, %v606
        %v613 = vadd.f32 %v583, %v607
        %s614 = sld [smem:[#allocation3 + $0x24]]
        %v615 = vstv %s614
        %v616 = vmul.f32 %v615, %v195
        %v617 = vmul.f32 %v615, %v202
        %v618 = vmul.f32 %v615, 0.0
        %s619 = sld [smem:[#allocation3 + $0xa4]]
        %v620 = vstv %s619
        %v621 = vmul.f32 %v620, %v217
        %v622 = vmul.f32 %v620, %v218
        %v623 = vmul.f32 %v620, 0.0
        %v624 = vadd.f32 %v616, %v621
        %v625 = vadd.f32 %v617, %v622
        %v626 = vadd.f32 %v618, %v623
        %630 = vrot.lane.b32.xlu0 %v624, 48
        %v631 = vpop.permute.xlu0 %630
        %632 = vrot.lane.b32.xlu0 %v625, 48
        %v633 = vpop.permute.xlu0 %632
        %634 = vrot.lane.b32.xlu0 %v626, 48
        %v635 = vpop.permute.xlu0 %634
        %v636 = vsel %vm415, %v631, %v633
        %v637 = vsel %vm415, %v633, %v635
        %v641 = vadd.f32 %v611, %v631
        %v642 = vadd.f32 %v612, %v636
        %v643 = vadd.f32 %v613, %v637
        %s644 = sld [smem:[#allocation3 + $0x2b]]
        %v645 = vstv %s644
        %v646 = vmul.f32 %v645, %v195
        %v647 = vmul.f32 %v645, %v202
        %v648 = vmul.f32 %v645, 0.0
        %s649 = sld [smem:[#allocation3 + $0xab]]
        %v650 = vstv %s649
        %v651 = vmul.f32 %v650, %v217
        %v652 = vmul.f32 %v650, %v218
        %v653 = vmul.f32 %v650, 0.0
        %v654 = vadd.f32 %v646, %v651
        %v655 = vadd.f32 %v647, %v652
        %v656 = vadd.f32 %v648, %v653
        %660 = vrot.lane.b32.xlu0 %v654, 32
        %v661 = vpop.permute.xlu0 %660
        %662 = vrot.lane.b32.xlu0 %v655, 32
        %v663 = vpop.permute.xlu0 %662
        %664 = vrot.lane.b32.xlu0 %v656, 32
        %v665 = vpop.permute.xlu0 %664
        %v666 = vsel %vm446, %v661, %v663
        %v667 = vsel %vm446, %v663, %v665
        %v671 = vadd.f32 %v641, %v661
        %v672 = vadd.f32 %v642, %v666
        %v673 = vadd.f32 %v643, %v667
        %677 = vrot.lane.b32.xlu0 %v671, 50
        %v678 = vpop.permute.xlu0 %677
        %679 = vrot.lane.b32.xlu0 %v672, 50
        %v680 = vpop.permute.xlu0 %679
        %681 = vrot.lane.b32.xlu0 %v673, 50
        %v682 = vpop.permute.xlu0 %681
        %vm683 = vcmask 408576
        %v684 = vsel %vm683, %v678, %v680
        %v685 = vsel %vm683, %v680, %v682
        %v688 = vsel %vm479, %v684, 0.0
        %v689 = vsel %vm480, %v685, 0.0
        %v690 = vadd.f32 %v471, %v688
        %v691 = vadd.f32 %v472, %v689
        %v692 = vadd.s32 %v244, 4294967295
        %v693 = vadd.s32 %v245, 4294967295
        %vm694 = vcmp.ge.s32.totalorder %v692, 0
        %vm695 = vcmp.ge.s32.totalorder %v693, 0
        %vm696 = vcmp.lt.s32.totalorder %v692, 16
        %vm697 = vcmp.lt.s32.totalorder %v693, 16
        %vm698 = vmand %vm694, %vm696
        %vm699 = vmand %vm695, %vm697
        %s700 = sld [smem:[#allocation3 + $0x2]]
        %v701 = vstv %s700
        %v702 = vmul.f32 %v701, 0.0
        %v703 = vmul.f32 %v701, %v195
        %v704 = vmul.f32 %v701, %v202
        %s705 = sld [smem:[#allocation3 + $0x82]]
        %v706 = vstv %s705
        %v707 = vmul.f32 %v706, 0.0
        %v708 = vmul.f32 %v706, %v217
        %v709 = vmul.f32 %v706, %v218
        %v710 = vadd.f32 %v702, %v707
        %v711 = vadd.f32 %v703, %v708
        %v712 = vadd.f32 %v704, %v709
        %s713 = sld [smem:[#allocation3 + $0x9]]
        %v714 = vstv %s713
        %v715 = vmul.f32 %v714, 0.0
        %v716 = vmul.f32 %v714, %v195
        %v717 = vmul.f32 %v714, %v202
        %s718 = sld [smem:[#allocation3 + $0x89]]
        %v719 = vstv %s718
        %v720 = vmul.f32 %v719, 0.0
        %v721 = vmul.f32 %v719, %v217
        %v722 = vmul.f32 %v719, %v218
        %v723 = vadd.f32 %v715, %v720
        %v724 = vadd.f32 %v716, %v721
        %v725 = vadd.f32 %v717, %v722
        %729 = vrot.lane.b32.xlu0 %v723, 112
        %v730 = vpop.permute.xlu0 %729
        %731 = vrot.lane.b32.xlu0 %v724, 112
        %v732 = vpop.permute.xlu0 %731
        %733 = vrot.lane.b32.xlu0 %v725, 112
        %v734 = vpop.permute.xlu0 %733
        %v735 = vsel %vm291, %v730, %v732
        %v736 = vsel %vm291, %v732, %v734
        %v740 = vadd.f32 %v710, %v735
        %v741 = vadd.f32 %v711, %v736
        %v742 = vadd.f32 %v712, %v734
        %s743 = sld [smem:[#allocation3 + $0x10]]
        %v744 = vstv %s743
        %v745 = vmul.f32 %v744, 0.0
        %v746 = vmul.f32 %v744, %v195
        %v747 = vmul.f32 %v744, %v202
        %s748 = sld [smem:[#allocation3 + $0x90]]
        %v749 = vstv %s748
        %v750 = vmul.f32 %v749, 0.0
        %v751 = vmul.f32 %v749, %v217
        %v752 = vmul.f32 %v749, %v218
        %v753 = vadd.f32 %v745, %v750
        %v754 = vadd.f32 %v746, %v751
        %v755 = vadd.f32 %v747, %v752
        %759 = vrot.lane.b32.xlu0 %v753, 96
        %v760 = vpop.permute.xlu0 %759
        %761 = vrot.lane.b32.xlu0 %v754, 96
        %v762 = vpop.permute.xlu0 %761
        %763 = vrot.lane.b32.xlu0 %v755, 96
        %v764 = vpop.permute.xlu0 %763
        %v765 = vsel %vm322, %v760, %v762
        %v766 = vsel %vm322, %v762, %v764
        %v770 = vadd.f32 %v740, %v765
        %v771 = vadd.f32 %v741, %v766
        %v772 = vadd.f32 %v742, %v764
        %s773 = sld [smem:[#allocation3 + $0x17]]
        %v774 = vstv %s773
        %v775 = vmul.f32 %v774, 0.0
        %v776 = vmul.f32 %v774, %v195
        %v777 = vmul.f32 %v774, %v202
        %s778 = sld [smem:[#allocation3 + $0x97]]
        %v779 = vstv %s778
        %v780 = vmul.f32 %v779, 0.0
        %v781 = vmul.f32 %v779, %v217
        %v782 = vmul.f32 %v779, %v218
        %v783 = vadd.f32 %v775, %v780
        %v784 = vadd.f32 %v776, %v781
        %v785 = vadd.f32 %v777, %v782
        %789 = vrot.lane.b32.xlu0 %v783, 80
        %v790 = vpop.permute.xlu0 %789
        %791 = vrot.lane.b32.xlu0 %v784, 80
        %v792 = vpop.permute.xlu0 %791
        %793 = vrot.lane.b32.xlu0 %v785, 80
        %v794 = vpop.permute.xlu0 %793
        %v795 = vsel %vm353, %v790, %v792
        %v796 = vsel %vm353, %v792, %v794
        %v800 = vadd.f32 %v770, %v795
        %v801 = vadd.f32 %v771, %v796
        %v802 = vadd.f32 %v772, %v794
        %s803 = sld [smem:[#allocation3 + $0x1e]]
        %v804 = vstv %s803
        %v805 = vmul.f32 %v804, %v195
        %v806 = vmul.f32 %v804, %v202
        %v807 = vmul.f32 %v804, 0.0
        %s808 = sld [smem:[#allocation3 + $0x9e]]
        %v809 = vstv %s808
        %v810 = vmul.f32 %v809, %v217
        %v811 = vmul.f32 %v809, %v218
        %v812 = vmul.f32 %v809, 0.0
        %v813 = vadd.f32 %v805, %v810
        %v814 = vadd.f32 %v806, %v811
        %v815 = vadd.f32 %v807, %v812
        %819 = vrot.lane.b32.xlu0 %v813, 64
        %v820 = vpop.permute.xlu0 %819
        %821 = vrot.lane.b32.xlu0 %v814, 64
        %v822 = vpop.permute.xlu0 %821
        %823 = vrot.lane.b32.xlu0 %v815, 64
        %v824 = vpop.permute.xlu0 %823
        %v825 = vsel %vm384, %v820, %v822
        %v826 = vsel %vm384, %v822, %v824
        %v830 = vadd.f32 %v800, %v820
        %v831 = vadd.f32 %v801, %v825
        %v832 = vadd.f32 %v802, %v826
        %s833 = sld [smem:[#allocation3 + $0x25]]
        %v834 = vstv %s833
        %v835 = vmul.f32 %v834, %v195
        %v836 = vmul.f32 %v834, %v202
        %v837 = vmul.f32 %v834, 0.0
        %s838 = sld [smem:[#allocation3 + $0xa5]]
        %v839 = vstv %s838
        %v840 = vmul.f32 %v839, %v217
        %v841 = vmul.f32 %v839, %v218
        %v842 = vmul.f32 %v839, 0.0
        %v843 = vadd.f32 %v835, %v840
        %v844 = vadd.f32 %v836, %v841
        %v845 = vadd.f32 %v837, %v842
        %849 = vrot.lane.b32.xlu0 %v843, 48
        %v850 = vpop.permute.xlu0 %849
        %851 = vrot.lane.b32.xlu0 %v844, 48
        %v852 = vpop.permute.xlu0 %851
        %853 = vrot.lane.b32.xlu0 %v845, 48
        %v854 = vpop.permute.xlu0 %853
        %v855 = vsel %vm415, %v850, %v852
        %v856 = vsel %vm415, %v852, %v854
        %v860 = vadd.f32 %v830, %v850
        %v861 = vadd.f32 %v831, %v855
        %v862 = vadd.f32 %v832, %v856
        %s863 = sld [smem:[#allocation3 + $0x2c]]
        %v864 = vstv %s863
        %v865 = vmul.f32 %v864, %v195
        %v866 = vmul.f32 %v864, %v202
        %v867 = vmul.f32 %v864, 0.0
        %s868 = sld [smem:[#allocation3 + $0xac]]
        %v869 = vstv %s868
        %v870 = vmul.f32 %v869, %v217
        %v871 = vmul.f32 %v869, %v218
        %v872 = vmul.f32 %v869, 0.0
        %v873 = vadd.f32 %v865, %v870
        %v874 = vadd.f32 %v866, %v871
        %v875 = vadd.f32 %v867, %v872
        %879 = vrot.lane.b32.xlu0 %v873, 32
        %v880 = vpop.permute.xlu0 %879
        %881 = vrot.lane.b32.xlu0 %v874, 32
        %v882 = vpop.permute.xlu0 %881
        %883 = vrot.lane.b32.xlu0 %v875, 32
        %v884 = vpop.permute.xlu0 %883
        %v885 = vsel %vm446, %v880, %v882
        %v886 = vsel %vm446, %v882, %v884
        %v890 = vadd.f32 %v860, %v880
        %v891 = vadd.f32 %v861, %v885
        %v892 = vadd.f32 %v862, %v886
        %896 = vrot.lane.b32.xlu0 %v890, 49
        %v897 = vpop.permute.xlu0 %896
        %898 = vrot.lane.b32.xlu0 %v891, 49
        %v899 = vpop.permute.xlu0 %898
        %900 = vrot.lane.b32.xlu0 %v892, 49
        %v901 = vpop.permute.xlu0 %900
        %vm902 = vcmask 400384
        %v903 = vsel %vm902, %v897, %v899
        %v904 = vsel %vm902, %v899, %v901
        %v907 = vsel %vm698, %v903, 0.0
        %v908 = vsel %vm699, %v904, 0.0
        %v909 = vadd.f32 %v690, %v907
        %v910 = vadd.f32 %v691, %v908
        %vm911 = vcmp.ge.s32.totalorder %v244, 0
        %vm912 = vcmp.ge.s32.totalorder %v245, 0
        %vm913 = vcmp.lt.s32.totalorder %v244, 16
        %vm914 = vcmp.lt.s32.totalorder %v245, 16
        %vm915 = vmand %vm911, %vm913
        %vm916 = vmand %vm912, %vm914
        %s917 = sld [smem:[#allocation3 + $0x3]]
        %v918 = vstv %s917
        %v919 = vmul.f32 %v918, 0.0
        %v920 = vmul.f32 %v918, %v195
        %v921 = vmul.f32 %v918, %v202
        %s922 = sld [smem:[#allocation3 + $0x83]]
        %v923 = vstv %s922
        %v924 = vmul.f32 %v923, 0.0
        %v925 = vmul.f32 %v923, %v217
        %v926 = vmul.f32 %v923, %v218
        %v927 = vadd.f32 %v919, %v924
        %v928 = vadd.f32 %v920, %v925
        %v929 = vadd.f32 %v921, %v926
        %s930 = sld [smem:[#allocation3 + $0xa]]
        %v931 = vstv %s930
        %v932 = vmul.f32 %v931, 0.0
        %v933 = vmul.f32 %v931, %v195
        %v934 = vmul.f32 %v931, %v202
        %s935 = sld [smem:[#allocation3 + $0x8a]]
        %v936 = vstv %s935
        %v937 = vmul.f32 %v936, 0.0
        %v938 = vmul.f32 %v936, %v217
        %v939 = vmul.f32 %v936, %v218
        %v940 = vadd.f32 %v932, %v937
        %v941 = vadd.f32 %v933, %v938
        %v942 = vadd.f32 %v934, %v939
        %946 = vrot.lane.b32.xlu0 %v940, 112
        %v947 = vpop.permute.xlu0 %946
        %948 = vrot.lane.b32.xlu0 %v941, 112
        %v949 = vpop.permute.xlu0 %948
        %950 = vrot.lane.b32.xlu0 %v942, 112
        %v951 = vpop.permute.xlu0 %950
        %v952 = vsel %vm291, %v947, %v949
        %v953 = vsel %vm291, %v949, %v951
        %v957 = vadd.f32 %v927, %v952
        %v958 = vadd.f32 %v928, %v953
        %v959 = vadd.f32 %v929, %v951
        %s960 = sld [smem:[#allocation3 + $0x11]]
        %v961 = vstv %s960
        %v962 = vmul.f32 %v961, 0.0
        %v963 = vmul.f32 %v961, %v195
        %v964 = vmul.f32 %v961, %v202
        %s965 = sld [smem:[#allocation3 + $0x91]]
        %v966 = vstv %s965
        %v967 = vmul.f32 %v966, 0.0
        %v968 = vmul.f32 %v966, %v217
        %v969 = vmul.f32 %v966, %v218
        %v970 = vadd.f32 %v962, %v967
        %v971 = vadd.f32 %v963, %v968
        %v972 = vadd.f32 %v964, %v969
        %976 = vrot.lane.b32.xlu0 %v970, 96
        %v977 = vpop.permute.xlu0 %976
        %978 = vrot.lane.b32.xlu0 %v971, 96
        %v979 = vpop.permute.xlu0 %978
        %980 = vrot.lane.b32.xlu0 %v972, 96
        %v981 = vpop.permute.xlu0 %980
        %v982 = vsel %vm322, %v977, %v979
        %v983 = vsel %vm322, %v979, %v981
        %v987 = vadd.f32 %v957, %v982
        %v988 = vadd.f32 %v958, %v983
        %v989 = vadd.f32 %v959, %v981
        %s990 = sld [smem:[#allocation3 + $0x18]]
        %v991 = vstv %s990
        %v992 = vmul.f32 %v991, %v195
        %v993 = vmul.f32 %v991, %v202
        %s994 = sld [smem:[#allocation3 + $0x98]]
        %v995 = vstv %s994
        %v996 = vmul.f32 %v995, %v217
        %v997 = vmul.f32 %v995, %v218
        %v998 = vadd.f32 %v992, %v996
        %v999 = vadd.f32 %v993, %v997
        %1002 = vrot.lane.b32.xlu0 %v998, 80
        %v1003 = vpop.permute.xlu0 %1002
        %1004 = vrot.lane.b32.xlu0 %v999, 80
        %v1005 = vpop.permute.xlu0 %1004
        %v1006 = vsel %vm353, %v1003, %v1005
        %v1010 = vadd.f32 %v987, %v1003
        %v1011 = vadd.f32 %v988, %v1006
        %v1012 = vadd.f32 %v989, %v1005
        %s1013 = sld [smem:[#allocation3 + $0x1f]]
        %v1014 = vstv %s1013
        %v1015 = vmul.f32 %v1014, %v195
        %v1016 = vmul.f32 %v1014, %v202
        %v1017 = vmul.f32 %v1014, 0.0
        %s1018 = sld [smem:[#allocation3 + $0x9f]]
        %v1019 = vstv %s1018
        %v1020 = vmul.f32 %v1019, %v217
        %v1021 = vmul.f32 %v1019, %v218
        %v1022 = vmul.f32 %v1019, 0.0
        %v1023 = vadd.f32 %v1015, %v1020
        %v1024 = vadd.f32 %v1016, %v1021
        %v1025 = vadd.f32 %v1017, %v1022
        %1029 = vrot.lane.b32.xlu0 %v1023, 64
        %v1030 = vpop.permute.xlu0 %1029
        %1031 = vrot.lane.b32.xlu0 %v1024, 64
        %v1032 = vpop.permute.xlu0 %1031
        %1033 = vrot.lane.b32.xlu0 %v1025, 64
        %v1034 = vpop.permute.xlu0 %1033
        %v1035 = vsel %vm384, %v1030, %v1032
        %v1036 = vsel %vm384, %v1032, %v1034
        %v1040 = vadd.f32 %v1010, %v1030
        %v1041 = vadd.f32 %v1011, %v1035
        %v1042 = vadd.f32 %v1012, %v1036
        %s1043 = sld [smem:[#allocation3 + $0x26]]
        %v1044 = vstv %s1043
        %v1045 = vmul.f32 %v1044, %v195
        %v1046 = vmul.f32 %v1044, %v202
        %v1047 = vmul.f32 %v1044, 0.0
        %s1048 = sld [smem:[#allocation3 + $0xa6]]
        %v1049 = vstv %s1048
        %v1050 = vmul.f32 %v1049, %v217
        %v1051 = vmul.f32 %v1049, %v218
        %v1052 = vmul.f32 %v1049, 0.0
        %v1053 = vadd.f32 %v1045, %v1050
        %v1054 = vadd.f32 %v1046, %v1051
        %v1055 = vadd.f32 %v1047, %v1052
        %1059 = vrot.lane.b32.xlu0 %v1053, 48
        %v1060 = vpop.permute.xlu0 %1059
        %1061 = vrot.lane.b32.xlu0 %v1054, 48
        %v1062 = vpop.permute.xlu0 %1061
        %1063 = vrot.lane.b32.xlu0 %v1055, 48
        %v1064 = vpop.permute.xlu0 %1063
        %v1065 = vsel %vm415, %v1060, %v1062
        %v1066 = vsel %vm415, %v1062, %v1064
        %v1070 = vadd.f32 %v1040, %v1060
        %v1071 = vadd.f32 %v1041, %v1065
        %v1072 = vadd.f32 %v1042, %v1066
        %s1073 = sld [smem:[#allocation3 + $0x2d]]
        %v1074 = vstv %s1073
        %v1075 = vmul.f32 %v1074, %v195
        %v1076 = vmul.f32 %v1074, %v202
        %v1077 = vmul.f32 %v1074, 0.0
        %s1078 = sld [smem:[#allocation3 + $0xad]]
        %v1079 = vstv %s1078
        %v1080 = vmul.f32 %v1079, %v217
        %v1081 = vmul.f32 %v1079, %v218
        %v1082 = vmul.f32 %v1079, 0.0
        %v1083 = vadd.f32 %v1075, %v1080
        %v1084 = vadd.f32 %v1076, %v1081
        %v1085 = vadd.f32 %v1077, %v1082
        %1089 = vrot.lane.b32.xlu0 %v1083, 32
        %v1090 = vpop.permute.xlu0 %1089
        %1091 = vrot.lane.b32.xlu0 %v1084, 32
        %v1092 = vpop.permute.xlu0 %1091
        %1093 = vrot.lane.b32.xlu0 %v1085, 32
        %v1094 = vpop.permute.xlu0 %1093
        %v1095 = vsel %vm446, %v1090, %v1092
        %v1096 = vsel %vm446, %v1092, %v1094
        %v1100 = vadd.f32 %v1070, %v1090
        %v1101 = vadd.f32 %v1071, %v1095
        %v1102 = vadd.f32 %v1072, %v1096
        %1106 = vrot.lane.b32.xlu0 %v1100, 48
        %v1107 = vpop.permute.xlu0 %1106
        %1108 = vrot.lane.b32.xlu0 %v1101, 48
        %v1109 = vpop.permute.xlu0 %1108
        %1110 = vrot.lane.b32.xlu0 %v1102, 48
        %v1111 = vpop.permute.xlu0 %1110
        %v1112 = vsel %vm415, %v1107, %v1109
        %v1113 = vsel %vm415, %v1109, %v1111
        %v1116 = vsel %vm915, %v1112, 0.0
        %v1117 = vsel %vm916, %v1113, 0.0
        %v1118 = vadd.f32 %v909, %v1116
        %v1119 = vadd.f32 %v910, %v1117
        %v1120 = vadd.s32 %v244, 1
        %v1121 = vadd.s32 %v245, 1
        %vm1122 = vcmp.ge.s32.totalorder %v1120, 0
        %vm1123 = vcmp.ge.s32.totalorder %v1121, 0
        %vm1124 = vcmp.lt.s32.totalorder %v1120, 16
        %vm1125 = vcmp.lt.s32.totalorder %v1121, 16
        %vm1126 = vmand %vm1122, %vm1124
        %vm1127 = vmand %vm1123, %vm1125
        %s1128 = sld [smem:[#allocation3 + $0x4]]
        %v1129 = vstv %s1128
        %v1130 = vmul.f32 %v1129, 0.0
        %v1131 = vmul.f32 %v1129, %v195
        %v1132 = vmul.f32 %v1129, %v202
        %s1133 = sld [smem:[#allocation3 + $0x84]]
        %v1134 = vstv %s1133
        %v1135 = vmul.f32 %v1134, 0.0
        %v1136 = vmul.f32 %v1134, %v217
        %v1137 = vmul.f32 %v1134, %v218
        %v1138 = vadd.f32 %v1130, %v1135
        %v1139 = vadd.f32 %v1131, %v1136
        %v1140 = vadd.f32 %v1132, %v1137
        %s1141 = sld [smem:[#allocation3 + $0xb]]
        %v1142 = vstv %s1141
        %v1143 = vmul.f32 %v1142, 0.0
        %v1144 = vmul.f32 %v1142, %v195
        %v1145 = vmul.f32 %v1142, %v202
        %s1146 = sld [smem:[#allocation3 + $0x8b]]
        %v1147 = vstv %s1146
        %v1148 = vmul.f32 %v1147, 0.0
        %v1149 = vmul.f32 %v1147, %v217
        %v1150 = vmul.f32 %v1147, %v218
        %v1151 = vadd.f32 %v1143, %v1148
        %v1152 = vadd.f32 %v1144, %v1149
        %v1153 = vadd.f32 %v1145, %v1150
        %1157 = vrot.lane.b32.xlu0 %v1151, 112
        %v1158 = vpop.permute.xlu0 %1157
        %1159 = vrot.lane.b32.xlu0 %v1152, 112
        %v1160 = vpop.permute.xlu0 %1159
        %1161 = vrot.lane.b32.xlu0 %v1153, 112
        %v1162 = vpop.permute.xlu0 %1161
        %v1163 = vsel %vm291, %v1158, %v1160
        %v1164 = vsel %vm291, %v1160, %v1162
        %v1168 = vadd.f32 %v1138, %v1163
        %v1169 = vadd.f32 %v1139, %v1164
        %v1170 = vadd.f32 %v1140, %v1162
        %s1171 = sld [smem:[#allocation3 + $0x12]]
        %v1172 = vstv %s1171
        %v1173 = vmul.f32 %v1172, 0.0
        %v1174 = vmul.f32 %v1172, %v195
        %v1175 = vmul.f32 %v1172, %v202
        %s1176 = sld [smem:[#allocation3 + $0x92]]
        %v1177 = vstv %s1176
        %v1178 = vmul.f32 %v1177, 0.0
        %v1179 = vmul.f32 %v1177, %v217
        %v1180 = vmul.f32 %v1177, %v218
        %v1181 = vadd.f32 %v1173, %v1178
        %v1182 = vadd.f32 %v1174, %v1179
        %v1183 = vadd.f32 %v1175, %v1180
        %1187 = vrot.lane.b32.xlu0 %v1181, 96
        %v1188 = vpop.permute.xlu0 %1187
        %1189 = vrot.lane.b32.xlu0 %v1182, 96
        %v1190 = vpop.permute.xlu0 %1189
        %1191 = vrot.lane.b32.xlu0 %v1183, 96
        %v1192 = vpop.permute.xlu0 %1191
        %v1193 = vsel %vm322, %v1188, %v1190
        %v1194 = vsel %vm322, %v1190, %v1192
        %v1198 = vadd.f32 %v1168, %v1193
        %v1199 = vadd.f32 %v1169, %v1194
        %v1200 = vadd.f32 %v1170, %v1192
        %s1201 = sld [smem:[#allocation3 + $0x19]]
        %v1202 = vstv %s1201
        %v1203 = vmul.f32 %v1202, %v195
        %v1204 = vmul.f32 %v1202, %v202
        %v1205 = vmul.f32 %v1202, 0.0
        %s1206 = sld [smem:[#allocation3 + $0x99]]
        %v1207 = vstv %s1206
        %v1208 = vmul.f32 %v1207, %v217
        %v1209 = vmul.f32 %v1207, %v218
        %v1210 = vmul.f32 %v1207, 0.0
        %v1211 = vadd.f32 %v1203, %v1208
        %v1212 = vadd.f32 %v1204, %v1209
        %v1213 = vadd.f32 %v1205, %v1210
        %1217 = vrot.lane.b32.xlu0 %v1211, 80
        %v1218 = vpop.permute.xlu0 %1217
        %1219 = vrot.lane.b32.xlu0 %v1212, 80
        %v1220 = vpop.permute.xlu0 %1219
        %1221 = vrot.lane.b32.xlu0 %v1213, 80
        %v1222 = vpop.permute.xlu0 %1221
        %v1223 = vsel %vm353, %v1218, %v1220
        %v1224 = vsel %vm353, %v1220, %v1222
        %v1228 = vadd.f32 %v1198, %v1218
        %v1229 = vadd.f32 %v1199, %v1223
        %v1230 = vadd.f32 %v1200, %v1224
        %s1231 = sld [smem:[#allocation3 + $0x20]]
        %v1232 = vstv %s1231
        %v1233 = vmul.f32 %v1232, %v195
        %v1234 = vmul.f32 %v1232, %v202
        %v1235 = vmul.f32 %v1232, 0.0
        %s1236 = sld [smem:[#allocation3 + $0xa0]]
        %v1237 = vstv %s1236
        %v1238 = vmul.f32 %v1237, %v217
        %v1239 = vmul.f32 %v1237, %v218
        %v1240 = vmul.f32 %v1237, 0.0
        %v1241 = vadd.f32 %v1233, %v1238
        %v1242 = vadd.f32 %v1234, %v1239
        %v1243 = vadd.f32 %v1235, %v1240
        %1247 = vrot.lane.b32.xlu0 %v1241, 64
        %v1248 = vpop.permute.xlu0 %1247
        %1249 = vrot.lane.b32.xlu0 %v1242, 64
        %v1250 = vpop.permute.xlu0 %1249
        %1251 = vrot.lane.b32.xlu0 %v1243, 64
        %v1252 = vpop.permute.xlu0 %1251
        %v1253 = vsel %vm384, %v1248, %v1250
        %v1254 = vsel %vm384, %v1250, %v1252
        %v1258 = vadd.f32 %v1228, %v1248
        %v1259 = vadd.f32 %v1229, %v1253
        %v1260 = vadd.f32 %v1230, %v1254
        %s1261 = sld [smem:[#allocation3 + $0x27]]
        %v1262 = vstv %s1261
        %v1263 = vmul.f32 %v1262, %v195
        %v1264 = vmul.f32 %v1262, %v202
        %v1265 = vmul.f32 %v1262, 0.0
        %s1266 = sld [smem:[#allocation3 + $0xa7]]
        %v1267 = vstv %s1266
        %v1268 = vmul.f32 %v1267, %v217
        %v1269 = vmul.f32 %v1267, %v218
        %v1270 = vmul.f32 %v1267, 0.0
        %v1271 = vadd.f32 %v1263, %v1268
        %v1272 = vadd.f32 %v1264, %v1269
        %v1273 = vadd.f32 %v1265, %v1270
        %1277 = vrot.lane.b32.xlu0 %v1271, 48
        %v1278 = vpop.permute.xlu0 %1277
        %1279 = vrot.lane.b32.xlu0 %v1272, 48
        %v1280 = vpop.permute.xlu0 %1279
        %1281 = vrot.lane.b32.xlu0 %v1273, 48
        %v1282 = vpop.permute.xlu0 %1281
        %v1283 = vsel %vm415, %v1278, %v1280
        %v1284 = vsel %vm415, %v1280, %v1282
        %v1288 = vadd.f32 %v1258, %v1278
        %v1289 = vadd.f32 %v1259, %v1283
        %v1290 = vadd.f32 %v1260, %v1284
        %s1291 = sld [smem:[#allocation3 + $0x2e]]
        %v1292 = vstv %s1291
        %v1293 = vmul.f32 %v1292, %v195
        %v1294 = vmul.f32 %v1292, %v202
        %v1295 = vmul.f32 %v1292, 0.0
        %s1296 = sld [smem:[#allocation3 + $0xae]]
        %v1297 = vstv %s1296
        %v1298 = vmul.f32 %v1297, %v217
        %v1299 = vmul.f32 %v1297, %v218
        %v1300 = vmul.f32 %v1297, 0.0
        %v1301 = vadd.f32 %v1293, %v1298
        %v1302 = vadd.f32 %v1294, %v1299
        %v1303 = vadd.f32 %v1295, %v1300
        %1307 = vrot.lane.b32.xlu0 %v1301, 32
        %v1308 = vpop.permute.xlu0 %1307
        %1309 = vrot.lane.b32.xlu0 %v1302, 32
        %v1310 = vpop.permute.xlu0 %1309
        %1311 = vrot.lane.b32.xlu0 %v1303, 32
        %v1312 = vpop.permute.xlu0 %1311
        %v1313 = vsel %vm446, %v1308, %v1310
        %v1314 = vsel %vm446, %v1310, %v1312
        %v1318 = vadd.f32 %v1288, %v1308
        %v1319 = vadd.f32 %v1289, %v1313
        %v1320 = vadd.f32 %v1290, %v1314
        %1324 = vrot.lane.b32.xlu0 %v1318, 47
        %v1325 = vpop.permute.xlu0 %1324
        %1326 = vrot.lane.b32.xlu0 %v1319, 47
        %v1327 = vpop.permute.xlu0 %1326
        %1328 = vrot.lane.b32.xlu0 %v1320, 47
        %v1329 = vpop.permute.xlu0 %1328
        %vm1330 = vcmask 384000
        %v1331 = vsel %vm1330, %v1325, %v1327
        %v1332 = vsel %vm1330, %v1327, %v1329
        %v1335 = vsel %vm1126, %v1331, 0.0
        %v1336 = vsel %vm1127, %v1332, 0.0
        %v1337 = vadd.f32 %v1118, %v1335
        %v1338 = vadd.f32 %v1119, %v1336
        %v1339 = vadd.s32 %v244, 2
        %v1340 = vadd.s32 %v245, 2
        %vm1341 = vcmp.ge.s32.totalorder %v1339, 0
        %vm1342 = vcmp.ge.s32.totalorder %v1340, 0
        %vm1343 = vcmp.lt.s32.totalorder %v1339, 16
        %vm1344 = vcmp.lt.s32.totalorder %v1340, 16
        %vm1345 = vmand %vm1341, %vm1343
        %vm1346 = vmand %vm1342, %vm1344
        %s1347 = sld [smem:[#allocation3 + $0x5]]
        %v1348 = vstv %s1347
        %v1349 = vmul.f32 %v1348, 0.0
        %v1350 = vmul.f32 %v1348, %v195
        %v1351 = vmul.f32 %v1348, %v202
        %s1352 = sld [smem:[#allocation3 + $0x85]]
        %v1353 = vstv %s1352
        %v1354 = vmul.f32 %v1353, 0.0
        %v1355 = vmul.f32 %v1353, %v217
        %v1356 = vmul.f32 %v1353, %v218
        %v1357 = vadd.f32 %v1349, %v1354
        %v1358 = vadd.f32 %v1350, %v1355
        %v1359 = vadd.f32 %v1351, %v1356
        %s1360 = sld [smem:[#allocation3 + $0xc]]
        %v1361 = vstv %s1360
        %v1362 = vmul.f32 %v1361, 0.0
        %v1363 = vmul.f32 %v1361, %v195
        %v1364 = vmul.f32 %v1361, %v202
        %s1365 = sld [smem:[#allocation3 + $0x8c]]
        %v1366 = vstv %s1365
        %v1367 = vmul.f32 %v1366, 0.0
        %v1368 = vmul.f32 %v1366, %v217
        %v1369 = vmul.f32 %v1366, %v218
        %v1370 = vadd.f32 %v1362, %v1367
        %v1371 = vadd.f32 %v1363, %v1368
        %v1372 = vadd.f32 %v1364, %v1369
        %1376 = vrot.lane.b32.xlu0 %v1370, 112
        %v1377 = vpop.permute.xlu0 %1376
        %1378 = vrot.lane.b32.xlu0 %v1371, 112
        %v1379 = vpop.permute.xlu0 %1378
        %1380 = vrot.lane.b32.xlu0 %v1372, 112
        %v1381 = vpop.permute.xlu0 %1380
        %v1382 = vsel %vm291, %v1377, %v1379
        %v1383 = vsel %vm291, %v1379, %v1381
        %v1387 = vadd.f32 %v1357, %v1382
        %v1388 = vadd.f32 %v1358, %v1383
        %v1389 = vadd.f32 %v1359, %v1381
        %s1390 = sld [smem:[#allocation3 + $0x13]]
        %v1391 = vstv %s1390
        %v1392 = vmul.f32 %v1391, 0.0
        %v1393 = vmul.f32 %v1391, %v195
        %v1394 = vmul.f32 %v1391, %v202
        %s1395 = sld [smem:[#allocation3 + $0x93]]
        %v1396 = vstv %s1395
        %v1397 = vmul.f32 %v1396, 0.0
        %v1398 = vmul.f32 %v1396, %v217
        %v1399 = vmul.f32 %v1396, %v218
        %v1400 = vadd.f32 %v1392, %v1397
        %v1401 = vadd.f32 %v1393, %v1398
        %v1402 = vadd.f32 %v1394, %v1399
        %1406 = vrot.lane.b32.xlu0 %v1400, 96
        %v1407 = vpop.permute.xlu0 %1406
        %1408 = vrot.lane.b32.xlu0 %v1401, 96
        %v1409 = vpop.permute.xlu0 %1408
        %1410 = vrot.lane.b32.xlu0 %v1402, 96
        %v1411 = vpop.permute.xlu0 %1410
        %v1412 = vsel %vm322, %v1407, %v1409
        %v1413 = vsel %vm322, %v1409, %v1411
        %v1417 = vadd.f32 %v1387, %v1412
        %v1418 = vadd.f32 %v1388, %v1413
        %v1419 = vadd.f32 %v1389, %v1411
        %s1420 = sld [smem:[#allocation3 + $0x1a]]
        %v1421 = vstv %s1420
        %v1422 = vmul.f32 %v1421, %v195
        %v1423 = vmul.f32 %v1421, %v202
        %v1424 = vmul.f32 %v1421, 0.0
        %s1425 = sld [smem:[#allocation3 + $0x9a]]
        %v1426 = vstv %s1425
        %v1427 = vmul.f32 %v1426, %v217
        %v1428 = vmul.f32 %v1426, %v218
        %v1429 = vmul.f32 %v1426, 0.0
        %v1430 = vadd.f32 %v1422, %v1427
        %v1431 = vadd.f32 %v1423, %v1428
        %v1432 = vadd.f32 %v1424, %v1429
        %1436 = vrot.lane.b32.xlu0 %v1430, 80
        %v1437 = vpop.permute.xlu0 %1436
        %1438 = vrot.lane.b32.xlu0 %v1431, 80
        %v1439 = vpop.permute.xlu0 %1438
        %1440 = vrot.lane.b32.xlu0 %v1432, 80
        %v1441 = vpop.permute.xlu0 %1440
        %v1442 = vsel %vm353, %v1437, %v1439
        %v1443 = vsel %vm353, %v1439, %v1441
        %v1447 = vadd.f32 %v1417, %v1437
        %v1448 = vadd.f32 %v1418, %v1442
        %v1449 = vadd.f32 %v1419, %v1443
        %s1450 = sld [smem:[#allocation3 + $0x21]]
        %v1451 = vstv %s1450
        %v1452 = vmul.f32 %v1451, %v195
        %v1453 = vmul.f32 %v1451, %v202
        %v1454 = vmul.f32 %v1451, 0.0
        %s1455 = sld [smem:[#allocation3 + $0xa1]]
        %v1456 = vstv %s1455
        %v1457 = vmul.f32 %v1456, %v217
        %v1458 = vmul.f32 %v1456, %v218
        %v1459 = vmul.f32 %v1456, 0.0
        %v1460 = vadd.f32 %v1452, %v1457
        %v1461 = vadd.f32 %v1453, %v1458
        %v1462 = vadd.f32 %v1454, %v1459
        %1466 = vrot.lane.b32.xlu0 %v1460, 64
        %v1467 = vpop.permute.xlu0 %1466
        %1468 = vrot.lane.b32.xlu0 %v1461, 64
        %v1469 = vpop.permute.xlu0 %1468
        %1470 = vrot.lane.b32.xlu0 %v1462, 64
        %v1471 = vpop.permute.xlu0 %1470
        %v1472 = vsel %vm384, %v1467, %v1469
        %v1473 = vsel %vm384, %v1469, %v1471
        %v1477 = vadd.f32 %v1447, %v1467
        %v1478 = vadd.f32 %v1448, %v1472
        %v1479 = vadd.f32 %v1449, %v1473
        %s1480 = sld [smem:[#allocation3 + $0x28]]
        %v1481 = vstv %s1480
        %v1482 = vmul.f32 %v1481, %v195
        %v1483 = vmul.f32 %v1481, %v202
        %v1484 = vmul.f32 %v1481, 0.0
        %s1485 = sld [smem:[#allocation3 + $0xa8]]
        %v1486 = vstv %s1485
        %v1487 = vmul.f32 %v1486, %v217
        %v1488 = vmul.f32 %v1486, %v218
        %v1489 = vmul.f32 %v1486, 0.0
        %v1490 = vadd.f32 %v1482, %v1487
        %v1491 = vadd.f32 %v1483, %v1488
        %v1492 = vadd.f32 %v1484, %v1489
        %1496 = vrot.lane.b32.xlu0 %v1490, 48
        %v1497 = vpop.permute.xlu0 %1496
        %1498 = vrot.lane.b32.xlu0 %v1491, 48
        %v1499 = vpop.permute.xlu0 %1498
        %1500 = vrot.lane.b32.xlu0 %v1492, 48
        %v1501 = vpop.permute.xlu0 %1500
        %v1502 = vsel %vm415, %v1497, %v1499
        %v1503 = vsel %vm415, %v1499, %v1501
        %v1507 = vadd.f32 %v1477, %v1497
        %v1508 = vadd.f32 %v1478, %v1502
        %v1509 = vadd.f32 %v1479, %v1503
        %s1510 = sld [smem:[#allocation3 + $0x2f]]
        %v1511 = vstv %s1510
        %v1512 = vmul.f32 %v1511, %v195
        %v1513 = vmul.f32 %v1511, %v202
        %v1514 = vmul.f32 %v1511, 0.0
        %s1515 = sld [smem:[#allocation3 + $0xaf]]
        %v1516 = vstv %s1515
        %v1517 = vmul.f32 %v1516, %v217
        %v1518 = vmul.f32 %v1516, %v218
        %v1519 = vmul.f32 %v1516, 0.0
        %v1520 = vadd.f32 %v1512, %v1517
        %v1521 = vadd.f32 %v1513, %v1518
        %v1522 = vadd.f32 %v1514, %v1519
        %1526 = vrot.lane.b32.xlu0 %v1520, 32
        %v1527 = vpop.permute.xlu0 %1526
        %1528 = vrot.lane.b32.xlu0 %v1521, 32
        %v1529 = vpop.permute.xlu0 %1528
        %1530 = vrot.lane.b32.xlu0 %v1522, 32
        %v1531 = vpop.permute.xlu0 %1530
        %v1532 = vsel %vm446, %v1527, %v1529
        %v1533 = vsel %vm446, %v1529, %v1531
        %v1537 = vadd.f32 %v1507, %v1527
        %v1538 = vadd.f32 %v1508, %v1532
        %v1539 = vadd.f32 %v1509, %v1533
        %1543 = vrot.lane.b32.xlu0 %v1537, 46
        %v1544 = vpop.permute.xlu0 %1543
        %1545 = vrot.lane.b32.xlu0 %v1538, 46
        %v1546 = vpop.permute.xlu0 %1545
        %1547 = vrot.lane.b32.xlu0 %v1539, 46
        %v1548 = vpop.permute.xlu0 %1547
        %vm1549 = vcmask 375808
        %v1550 = vsel %vm1549, %v1544, %v1546
        %v1551 = vsel %vm1549, %v1546, %v1548
        %v1554 = vsel %vm1345, %v1550, 0.0
        %v1555 = vsel %vm1346, %v1551, 0.0
        %v1556 = vadd.f32 %v1337, %v1554
        %v1557 = vadd.f32 %v1338, %v1555
        %v1558 = vadd.s32 %v244, 3
        %v1559 = vadd.s32 %v245, 3
        %vm1560 = vcmp.ge.s32.totalorder %v1558, 0
        %vm1561 = vcmp.ge.s32.totalorder %v1559, 0
        %vm1562 = vcmp.lt.s32.totalorder %v1558, 16
        %vm1563 = vcmp.lt.s32.totalorder %v1559, 16
        %vm1564 = vmand %vm1560, %vm1562
        %vm1565 = vmand %vm1561, %vm1563
        %s1566 = sld [smem:[#allocation3 + $0x6]]
        %v1567 = vstv %s1566
        %v1568 = vmul.f32 %v1567, 0.0
        %v1569 = vmul.f32 %v1567, %v195
        %v1570 = vmul.f32 %v1567, %v202
        %s1571 = sld [smem:[#allocation3 + $0x86]]
        %v1572 = vstv %s1571
        %v1573 = vmul.f32 %v1572, 0.0
        %v1574 = vmul.f32 %v1572, %v217
        %v1575 = vmul.f32 %v1572, %v218
        %v1576 = vadd.f32 %v1568, %v1573
        %v1577 = vadd.f32 %v1569, %v1574
        %v1578 = vadd.f32 %v1570, %v1575
        %s1579 = sld [smem:[#allocation3 + $0xd]]
        %v1580 = vstv %s1579
        %v1581 = vmul.f32 %v1580, 0.0
        %v1582 = vmul.f32 %v1580, %v195
        %v1583 = vmul.f32 %v1580, %v202
        %s1584 = sld [smem:[#allocation3 + $0x8d]]
        %v1585 = vstv %s1584
        %v1586 = vmul.f32 %v1585, 0.0
        %v1587 = vmul.f32 %v1585, %v217
        %v1588 = vmul.f32 %v1585, %v218
        %v1589 = vadd.f32 %v1581, %v1586
        %v1590 = vadd.f32 %v1582, %v1587
        %v1591 = vadd.f32 %v1583, %v1588
        %1595 = vrot.lane.b32.xlu0 %v1589, 112
        %v1596 = vpop.permute.xlu0 %1595
        %1597 = vrot.lane.b32.xlu0 %v1590, 112
        %v1598 = vpop.permute.xlu0 %1597
        %1599 = vrot.lane.b32.xlu0 %v1591, 112
        %v1600 = vpop.permute.xlu0 %1599
        %v1601 = vsel %vm291, %v1596, %v1598
        %v1602 = vsel %vm291, %v1598, %v1600
        %v1606 = vadd.f32 %v1576, %v1601
        %v1607 = vadd.f32 %v1577, %v1602
        %v1608 = vadd.f32 %v1578, %v1600
        %s1609 = sld [smem:[#allocation3 + $0x14]]
        %v1610 = vstv %s1609
        %v1611 = vmul.f32 %v1610, 0.0
        %v1612 = vmul.f32 %v1610, %v195
        %v1613 = vmul.f32 %v1610, %v202
        %s1614 = sld [smem:[#allocation3 + $0x94]]
        %v1615 = vstv %s1614
        %v1616 = vmul.f32 %v1615, 0.0
        %v1617 = vmul.f32 %v1615, %v217
        %v1618 = vmul.f32 %v1615, %v218
        %v1619 = vadd.f32 %v1611, %v1616
        %v1620 = vadd.f32 %v1612, %v1617
        %v1621 = vadd.f32 %v1613, %v1618
        %1625 = vrot.lane.b32.xlu0 %v1619, 96
        %v1626 = vpop.permute.xlu0 %1625
        %1627 = vrot.lane.b32.xlu0 %v1620, 96
        %v1628 = vpop.permute.xlu0 %1627
        %1629 = vrot.lane.b32.xlu0 %v1621, 96
        %v1630 = vpop.permute.xlu0 %1629
        %v1631 = vsel %vm322, %v1626, %v1628
        %v1632 = vsel %vm322, %v1628, %v1630
        %v1636 = vadd.f32 %v1606, %v1631
        %v1637 = vadd.f32 %v1607, %v1632
        %v1638 = vadd.f32 %v1608, %v1630
        %s1639 = sld [smem:[#allocation3 + $0x1b]]
        %v1640 = vstv %s1639
        %v1641 = vmul.f32 %v1640, %v195
        %v1642 = vmul.f32 %v1640, %v202
        %v1643 = vmul.f32 %v1640, 0.0
        %s1644 = sld [smem:[#allocation3 + $0x9b]]
        %v1645 = vstv %s1644
        %v1646 = vmul.f32 %v1645, %v217
        %v1647 = vmul.f32 %v1645, %v218
        %v1648 = vmul.f32 %v1645, 0.0
        %v1649 = vadd.f32 %v1641, %v1646
        %v1650 = vadd.f32 %v1642, %v1647
        %v1651 = vadd.f32 %v1643, %v1648
        %1655 = vrot.lane.b32.xlu0 %v1649, 80
        %v1656 = vpop.permute.xlu0 %1655
        %1657 = vrot.lane.b32.xlu0 %v1650, 80
        %v1658 = vpop.permute.xlu0 %1657
        %1659 = vrot.lane.b32.xlu0 %v1651, 80
        %v1660 = vpop.permute.xlu0 %1659
        %v1661 = vsel %vm353, %v1656, %v1658
        %v1662 = vsel %vm353, %v1658, %v1660
        %v1666 = vadd.f32 %v1636, %v1656
        %v1667 = vadd.f32 %v1637, %v1661
        %v1668 = vadd.f32 %v1638, %v1662
        %s1669 = sld [smem:[#allocation3 + $0x22]]
        %v1670 = vstv %s1669
        %v1671 = vmul.f32 %v1670, %v195
        %v1672 = vmul.f32 %v1670, %v202
        %v1673 = vmul.f32 %v1670, 0.0
        %s1674 = sld [smem:[#allocation3 + $0xa2]]
        %v1675 = vstv %s1674
        %v1676 = vmul.f32 %v1675, %v217
        %v1677 = vmul.f32 %v1675, %v218
        %v1678 = vmul.f32 %v1675, 0.0
        %v1679 = vadd.f32 %v1671, %v1676
        %v1680 = vadd.f32 %v1672, %v1677
        %v1681 = vadd.f32 %v1673, %v1678
        %1685 = vrot.lane.b32.xlu0 %v1679, 64
        %v1686 = vpop.permute.xlu0 %1685
        %1687 = vrot.lane.b32.xlu0 %v1680, 64
        %v1688 = vpop.permute.xlu0 %1687
        %1689 = vrot.lane.b32.xlu0 %v1681, 64
        %v1690 = vpop.permute.xlu0 %1689
        %v1691 = vsel %vm384, %v1686, %v1688
        %v1692 = vsel %vm384, %v1688, %v1690
        %v1696 = vadd.f32 %v1666, %v1686
        %v1697 = vadd.f32 %v1667, %v1691
        %v1698 = vadd.f32 %v1668, %v1692
        %s1699 = sld [smem:[#allocation3 + $0x29]]
        %v1700 = vstv %s1699
        %v1701 = vmul.f32 %v1700, %v195
        %v1702 = vmul.f32 %v1700, %v202
        %v1703 = vmul.f32 %v1700, 0.0
        %s1704 = sld [smem:[#allocation3 + $0xa9]]
        %v1705 = vstv %s1704
        %v1706 = vmul.f32 %v1705, %v217
        %v1707 = vmul.f32 %v1705, %v218
        %v1708 = vmul.f32 %v1705, 0.0
        %v1709 = vadd.f32 %v1701, %v1706
        %v1710 = vadd.f32 %v1702, %v1707
        %v1711 = vadd.f32 %v1703, %v1708
        %1715 = vrot.lane.b32.xlu0 %v1709, 48
        %v1716 = vpop.permute.xlu0 %1715
        %1717 = vrot.lane.b32.xlu0 %v1710, 48
        %v1718 = vpop.permute.xlu0 %1717
        %1719 = vrot.lane.b32.xlu0 %v1711, 48
        %v1720 = vpop.permute.xlu0 %1719
        %v1721 = vsel %vm415, %v1716, %v1718
        %v1722 = vsel %vm415, %v1718, %v1720
        %v1726 = vadd.f32 %v1696, %v1716
        %v1727 = vadd.f32 %v1697, %v1721
        %v1728 = vadd.f32 %v1698, %v1722
        %s1729 = sld [smem:[#allocation3 + $0x30]]
        %v1730 = vstv %s1729
        %v1731 = vmul.f32 %v1730, %v195
        %v1732 = vmul.f32 %v1730, %v202
        %v1733 = vmul.f32 %v1730, 0.0
        %s1734 = sld [smem:[#allocation3 + $0xb0]]
        %v1735 = vstv %s1734
        %v1736 = vmul.f32 %v1735, %v217
        %v1737 = vmul.f32 %v1735, %v218
        %v1738 = vmul.f32 %v1735, 0.0
        %v1739 = vadd.f32 %v1731, %v1736
        %v1740 = vadd.f32 %v1732, %v1737
        %v1741 = vadd.f32 %v1733, %v1738
        %1745 = vrot.lane.b32.xlu0 %v1739, 32
        %v1746 = vpop.permute.xlu0 %1745
        %1747 = vrot.lane.b32.xlu0 %v1740, 32
        %v1748 = vpop.permute.xlu0 %1747
        %1749 = vrot.lane.b32.xlu0 %v1741, 32
        %v1750 = vpop.permute.xlu0 %1749
        %v1751 = vsel %vm446, %v1746, %v1748
        %v1752 = vsel %vm446, %v1748, %v1750
        %v1756 = vadd.f32 %v1726, %v1746
        %v1757 = vadd.f32 %v1727, %v1751
        %v1758 = vadd.f32 %v1728, %v1752
        %1762 = vrot.lane.b32.xlu0 %v1756, 45
        %v1763 = vpop.permute.xlu0 %1762
        %1764 = vrot.lane.b32.xlu0 %v1757, 45
        %v1765 = vpop.permute.xlu0 %1764
        %1766 = vrot.lane.b32.xlu0 %v1758, 45
        %v1767 = vpop.permute.xlu0 %1766
        %vm1768 = vcmask 367616
        %v1769 = vsel %vm1768, %v1763, %v1765
        %v1770 = vsel %vm1768, %v1765, %v1767
        %v1773 = vsel %vm1564, %v1769, 0.0
        %v1774 = vsel %vm1565, %v1770, 0.0
        %v1775 = vadd.f32 %v1556, %v1773
        %v1776 = vadd.f32 %v1557, %v1774
        %v1777 = vxor.u32 %v1775, 2147483648
        %v1778 = vxor.u32 %v1776, 2147483648
        %v1779 = vmul.f32 %v1777, 1.442695
        %v1780 = vpow.pop %v1779
        %v1781 = vmul.f32 %v1778, 1.442695
        %v1782 = vpow.pop %v1781
        %v1783 = vadd.f32 %v1780, 1.0
        %v1784 = vadd.f32 %v1782, 1.0
        %v1785 = vrcp.pop %v1783
        %v1786 = vmul.f32 1.0, %v1785
        %v1787 = vrcp.pop %v1784
        %v1788 = vmul.f32 1.0, %v1787
        %v1791 = vcombine.low %v1786, %v1788
        %v1793 = vunpack.c.l.s4 1966171168
        %v1794 = vunpack.c.0.s8 %v1793
        %v1795 = vlaneseq
        %v1796 = vshrl.u32 %v1795, 7
        %v1797 = vsub.s32 %v1794, %v1796
        %v1798 = vrot.slane %v1791, %v1797
        %v1800 = vunpack.c.l.s4 1966171168
        %v1801 = vunpack.c.0.s8 %v1800
        %v1802 = vlaneseq
        %v1803 = vshrl.u32 %v1802, 7
        %v1804 = vsub.s32 %v1801, %v1803
        %v1805 = vrot.slane %v1798, %v1804
        %v1807 = vlaneseq
        %vm1808 = vcmp.ge.s32.totalorder %v1807, 0
        %vm1809 = vcmp.lt.s32.totalorder %v1807, 256
        %vm1810 = vmand %vm1808, %vm1809
        %1811 = vst.msk [vmem:[%s183] sm:$0x3] %vm1810, %v1805
        %p1812 = scmp.lt.s32.totalorder %s16, 1
        %s1813 = scalar_select %p1812, %s16, 1
        %s1814 = smul.addr %s1813, 2
        %s1815 = scalar_lea.vmem %s3, %s1814
        // Predicated region
        $region37: #{spatial_gate_forward.1} parent=31 // pred_check
          %p1816 = pneg %p102
        $region38: #{spatial_gate_forward.1} parent=31 // pred_check_branch
          %1818 = sbr.rel (%p1816) target = $region40
        $region39: #{spatial_gate_forward.1} parent=31 // pred_region
          _
        $region40: #{spatial_gate_forward.1} parent=31 // pred_fallthru
          _
      $region32: #{spatial_gate_forward.1} parent=5 // pred_fallthru
        _
      %p1819 = scmp.le.s32.totalorder 2, %s11
      // Predicated region
      $region41: #{spatial_gate_forward.1} parent=5 // pred_check
        %p1820 = pneg %p1819
      $region42: #{spatial_gate_forward.1} parent=5 // pred_check_branch
        %1822 = sbr.rel (%p1820) target = $region44
      $region43: #{spatial_gate_forward.1} parent=5 // pred_region
        %s1823 = ssub.s32 %s11, 2
        // Predicated region
        $region45: #{spatial_gate_forward.1} parent=43 // pred_check
          %p1824 = pneg %p108
        $region46: #{spatial_gate_forward.1} parent=43 // pred_check_branch
          %1826 = sbr.rel (%p1824) target = $region48
        $region47: #{spatial_gate_forward.1} parent=43 // pred_region
          %p1827 = scmp.lt.s32.totalorder %s17, 1
          %s1828 = scalar_select %p1827, %s17, 1
          %s1829 = smul.addr %s1828, 2
          %s1830 = scalar_lea.vmem %s3, %s1829
        $region48: #{spatial_gate_forward.1} parent=43 // pred_fallthru
          _
      $region44: #{spatial_gate_forward.1} parent=5 // pred_fallthru
        _
    $region6: #{spatial_gate_forward.1} parent=1 // loop_footer
      %s15 = sadd.s32 1, %s11
    $region7: #{spatial_gate_forward.1} parent=1 // loop_footer_branch
      %10 = sbr.rel target = $region3
    $region8: #{spatial_gate_forward.1} parent=1 // loop_exit
      _
    %1831 = vsyncpa [#allocation4], 1
    %s1832 = scalar_lea.sflag [#allocation4], 1
    %1833 = vsyncpa %s1832, 1

</llo_original>
